<compile_context>
chip_gen: v6e
topology: v6e:2x2x1
jax: 0.10.0
libtpu: 0.0.40
codegen_flags: <defaults>
</compile_context>

<pallas_src>
import jax
import jax.numpy as jnp
from jax.experimental import pallas as pl
from jax.experimental.pallas import tpu as pltpu


def _round_up(a, b):
    return ((a + b - 1) // b) * b


def _silu_f32(x):
    # SiLU(x) = x*sigmoid(x) = 0.5*x*(tanh(x/2)+1): one EUP transcendental.
    return 0.5 * x * (jnp.tanh(0.5 * x) + 1.0)


def _separable_s2_kernel(scal_ref, x_ref, to_ref, fromT_ref, out_ref):
    # scal_ref : (1,  nblk)  scalar features, columns ordered z*C + c
    # x_ref    : (Ip, nblk)  SO(3) coefficients, nodes folded into the lane dim
    # to_ref   : (G,  Ip)    to-grid matrix      (resident across grid steps)
    # fromT_ref: (Ip, G)     from-grid matrix^T  (resident across grid steps)
    # out_ref  : (Ip, nblk)

    # to-grid: x_grid[g, n] = sum_i to[g, i] * x[i, n]   (bf16 in, f32 acc)
    x_grid = jnp.dot(to_ref[...], x_ref[...],
                     preferred_element_type=jnp.float32)            # (G, nblk)

    # point-wise SiLU on the sphere grid (f32, tanh form)
    x_grid = _silu_f32(x_grid)

    # from-grid: out[i, n] = sum_g fromT[i, g] * x_grid[g, n]
    out = jnp.dot(fromT_ref[...], x_grid.astype(fromT_ref.dtype),
                  preferred_element_type=jnp.float32)               # (Ip, nblk)

    # Scalar branch: SiLU(scalars) replaces coefficient row 0 (l=0, m=0),
    # reproducing torch.cat((silu(scalars), tensors[:, 1:, :]), dim=1).
    # Built with a sublane mask so the whole tile is written with ONE store.
    s = _silu_f32(scal_ref[...].astype(jnp.float32))                # (1, nblk)
    row = jax.lax.broadcasted_iota(jnp.int32, out.shape, 0)
    out = jnp.where(row == 0, s, out)

    out_ref[...] = out.astype(out_ref.dtype)


def separable_s2_activation(input_scalars, input_tensors,
                            to_grid_mat, from_grid_mat, *,
                            n_block=8192,
                            stream_dtype=jnp.bfloat16,
                            vmem_limit_bytes=64 * 1024 * 1024):
    """input_scalars: (Z, C); input_tensors: (Z, I, C);
    to_grid_mat / from_grid_mat: (res_beta, res_alpha, I).
    Returns (Z, I, C) in the dtype of input_tensors.

    n_block is the column (node*channel) block width; on v7x with large grid
    resolutions use ~4096 (64 MiB VMEM), on v5e/v6e 8192-16384 is fine."""
    Z, I, C = input_tensors.shape
    G = to_grid_mat.shape[0] * to_grid_mat.shape[1]
    N = Z * C
    out_dtype = input_tensors.dtype

    # Pad I to a sublane multiple (8); extra zero rows/cols are inert.
    Ip = _round_up(max(I, 8), 8)

    # Grid matrices: flatten once, pad I, pre-transpose from-grid, cast (tiny).
    to_flat = to_grid_mat.reshape(G, I)
    from_t = from_grid_mat.reshape(G, I).T                           # (I, G)
    if Ip > I:
        to_flat = jnp.pad(to_flat, ((0, 0), (0, Ip - I)))
        from_t = jnp.pad(from_t, ((0, Ip - I), (0, 0)))
    to_flat = to_flat.astype(stream_dtype)
    from_t = from_t.astype(stream_dtype)

    # Column-block sizing: lane-dense (multiple of 128), capped by n_block,
    # and >=2 blocks whenever N > 128 so megacore parts have work.
    target = max(128, (int(n_block) // 128) * 128)
    if N <= 128:
        nb = 1
    else:
        nb = max(2, -(-N // target))          # number of grid steps
    nblk = _round_up(-(-N // nb), 128)        # per-step columns (<= target)
    Np = nb * nblk

    # Fold the node axis into the matmul N / lane dimension (columns ordered
    # z*C + c); transpose + pad + bf16 cast fuse into one XLA pass. Zero
    # padding is inert: SiLU(0)=0 and the matmuls map zero columns to zero.
    x = jnp.transpose(input_tensors, (1, 0, 2)).reshape(I, N).astype(stream_dtype)
    x = jnp.pad(x, ((0, Ip - I), (0, Np - N)))
    s = jnp.pad(input_scalars.reshape(1, N).astype(stream_dtype),
                ((0, 0), (0, Np - N)))

    out = pl.pallas_call(
        _separable_s2_kernel,
        out_shape=jax.ShapeDtypeStruct((Ip, Np), out_dtype),
        grid_spec=pltpu.PrefetchScalarGridSpec(
            num_scalar_prefetch=0,
            grid=(nb,),
            in_specs=[
                pl.BlockSpec((1, nblk), lambda n: (0, n)),    # scalars
                pl.BlockSpec((Ip, nblk), lambda n: (0, n)),   # tensors (Ip, Z*C)
                pl.BlockSpec((G, Ip), lambda n: (0, 0)),      # to_grid (resident)
                pl.BlockSpec((Ip, G), lambda n: (0, 0)),      # from_grid^T (resident)
            ],
            out_specs=pl.BlockSpec((Ip, nblk), lambda n: (0, n)),
        ),
        compiler_params=pltpu.CompilerParams(
            dimension_semantics=("parallel",),
            vmem_limit_bytes=vmem_limit_bytes,
        ),
    )(s, x, to_flat, from_t)

    # Un-fold: (Ip, Np) -> (I, Z, C) -> (Z, I, C)
    return out[:I, :N].reshape(I, Z, C).transpose(1, 0, 2)


def _reference(input_scalars, input_tensors, to_grid_mat, from_grid_mat):
    # Pure-JAX f32 mirror of the PyTorch forward, for verification.
    x_grid = jnp.einsum('bai,zic->zbac', to_grid_mat, input_tensors)
    x_grid = x_grid * jax.nn.sigmoid(x_grid)
    tensors = jnp.einsum('bai,zbac->zic', from_grid_mat, x_grid)
    scalars = (input_scalars * jax.nn.sigmoid(input_scalars))[:, None, :]
    return jnp.concatenate((scalars, tensors[:, 1:, :]), axis=1)


if __name__ == "__main__":
    # Shapes consistent with the module:
    #   lmax = mmax = 3  ->  I = (lmax+1)^2 = 16
    #   SO3 grid resolution: res_beta = 8, res_alpha = 16  ->  G = 128
    #   Z nodes, C sphere channels (kept small; Z*C = 4096 -> 2 grid blocks).
    lmax = 3
    I = (lmax + 1) ** 2          # 16
    res_beta, res_alpha = 8, 16  # G = 128
    Z, C = 512, 8

    key = jax.random.PRNGKey(0)
    k1, k2, k3, k4 = jax.random.split(key, 4)
    input_scalars = jax.random.normal(k1, (Z, C), dtype=jnp.float32)
    input_tensors = jax.random.normal(k2, (Z, I, C), dtype=jnp.float32)
    # Deterministic synthetic SO3_grid matrices (the module pulls them from
    # SO3_grid at call time; here they are explicit inputs).
    to_grid_mat = jax.random.normal(k3, (res_beta, res_alpha, I), dtype=jnp.float32) * 0.1
    from_grid_mat = jax.random.normal(k4, (res_beta, res_alpha, I), dtype=jnp.float32) * 0.1

    out = separable_s2_activation(input_scalars, input_tensors,
                                  to_grid_mat, from_grid_mat)
    out = jax.block_until_ready(out)

    ref = _reference(input_scalars, input_tensors, to_grid_mat, from_grid_mat)
    assert out.shape == (Z, I, C)
    # bf16 streaming with f32 accumulation: validate with a loosened tolerance.
    assert jnp.allclose(out, ref, atol=3e-2, rtol=3e-2), float(jnp.max(jnp.abs(out - ref)))

    print("KERNEL_OK")
</pallas_src>

<mosaic_0001>
module attributes {stable_mosaic.version = 11 : i64} {
  func.func @_separable_s2_kernel(%arg0: i32, %arg1: memref<1x2048xbf16, #tpu.memory_space<vmem>>, %arg2: memref<16x2048xbf16, #tpu.memory_space<vmem>>, %arg3: memref<128x16xbf16, #tpu.memory_space<vmem>>, %arg4: memref<16x128xbf16, #tpu.memory_space<vmem>>, %arg5: memref<16x2048xf32, #tpu.memory_space<vmem>>) attributes {dimension_semantics = [#tpu.dimension_semantics<parallel>], iteration_bounds = array<i64: 2>, scalar_prefetch = 0 : i64, scratch_operands = 0 : i64, tpu.core_type = #tpu.core_type<tc>, window_params = [{transform_indices = @transform_0, window_bounds = array<i64: 1, 2048>}, {transform_indices = @transform_1, window_bounds = array<i64: 16, 2048>}, {pipeline_mode = #tpu.pipeline_mode<synchronous>, transform_indices = @transform_2, window_bounds = array<i64: 128, 16>}, {pipeline_mode = #tpu.pipeline_mode<synchronous>, transform_indices = @transform_3, window_bounds = array<i64: 16, 128>}, {transform_indices = @transform_4, window_bounds = array<i64: 16, 2048>}]} {
    %c0 = arith.constant 0 : index
    %c0_0 = arith.constant 0 : index
    %0 = vector.load %arg3[%c0, %c0_0] : memref<128x16xbf16, #tpu.memory_space<vmem>>, vector<128x16xbf16>
    %c0_1 = arith.constant 0 : index
    %c0_2 = arith.constant 0 : index
    %1 = vector.load %arg2[%c0_1, %c0_2] : memref<16x2048xbf16, #tpu.memory_space<vmem>>, vector<16x2048xbf16>
    %cst = arith.constant dense<0.000000e+00> : vector<128x2048xf32>
    %2 = tpu.matmul %0, %1, %cst {dimension_numbers = #tpu.dot_dimension_numbers<[1], [0], [0], [1], [0, 0, 1, 1], [], []>} : vector<128x16xbf16>, vector<16x2048xbf16>, vector<128x2048xf32> -> vector<128x2048xf32>
    %cst_3 = arith.constant 5.000000e-01 : f32
    %3 = vector.broadcast %cst_3 : f32 to vector<128x2048xf32>
    %4 = arith.mulf %3, %2 : vector<128x2048xf32>
    %cst_4 = arith.constant 5.000000e-01 : f32
    %5 = vector.broadcast %cst_4 : f32 to vector<128x2048xf32>
    %6 = arith.mulf %5, %2 : vector<128x2048xf32>
    %7 = math.tanh %6 : vector<128x2048xf32>
    %cst_5 = arith.constant 1.000000e+00 : f32
    %8 = vector.broadcast %cst_5 : f32 to vector<128x2048xf32>
    %9 = arith.addf %7, %8 : vector<128x2048xf32>
    %10 = arith.mulf %4, %9 : vector<128x2048xf32>
    %c0_6 = arith.constant 0 : index
    %c0_7 = arith.constant 0 : index
    %11 = vector.load %arg4[%c0_6, %c0_7] : memref<16x128xbf16, #tpu.memory_space<vmem>>, vector<16x128xbf16>
    %12 = arith.truncf %10 : vector<128x2048xf32> to vector<128x2048xbf16>
    %cst_8 = arith.constant dense<0.000000e+00> : vector<16x2048xf32>
    %13 = tpu.matmul %11, %12, %cst_8 {dimension_numbers = #tpu.dot_dimension_numbers<[1], [0], [0], [1], [0, 0, 1, 1], [], []>} : vector<16x128xbf16>, vector<128x2048xbf16>, vector<16x2048xf32> -> vector<16x2048xf32>
    %c0_9 = arith.constant 0 : index
    %c0_10 = arith.constant 0 : index
    %14 = vector.load %arg1[%c0_9, %c0_10] : memref<1x2048xbf16, #tpu.memory_space<vmem>>, vector<1x2048xbf16>
    %15 = arith.extf %14 : vector<1x2048xbf16> to vector<1x2048xf32>
    %cst_11 = arith.constant 5.000000e-01 : f32
    %16 = vector.broadcast %cst_11 : f32 to vector<1x2048xf32>
    %17 = arith.mulf %16, %15 : vector<1x2048xf32>
    %cst_12 = arith.constant 5.000000e-01 : f32
    %18 = vector.broadcast %cst_12 : f32 to vector<1x2048xf32>
    %19 = arith.mulf %18, %15 : vector<1x2048xf32>
    %20 = math.tanh %19 : vector<1x2048xf32>
    %cst_13 = arith.constant 1.000000e+00 : f32
    %21 = vector.broadcast %cst_13 : f32 to vector<1x2048xf32>
    %22 = arith.addf %20, %21 : vector<1x2048xf32>
    %23 = arith.mulf %17, %22 : vector<1x2048xf32>
    %24 = tpu.iota {dimensions = array<i32: 0>} : vector<16x2048xi32>
    %c0_i32 = arith.constant 0 : i32
    %25 = vector.broadcast %c0_i32 : i32 to vector<16x2048xi32>
    %26 = arith.cmpi eq, %24, %25 : vector<16x2048xi32>
    %27 = vector.shape_cast %23 : vector<1x2048xf32> to vector<1x2048xf32>
    %28 = vector.broadcast %27 : vector<1x2048xf32> to vector<16x2048xf32>
    %29 = arith.select %26, %28, %13 : vector<16x2048xi1>, vector<16x2048xf32>
    %c0_14 = arith.constant 0 : index
    %c0_15 = arith.constant 0 : index
    %30 = vector.load %arg5[%c0_14, %c0_15] : memref<16x2048xf32, #tpu.memory_space<vmem>>, vector<16x2048xf32>
    tpu.vector_store %arg5[%c0_14, %c0_15], %29 {strides = array<i32>} : memref<16x2048xf32, #tpu.memory_space<vmem>>, vector<16x2048xf32>,
    return
  }
  func.func @transform_0(%arg0: i32) -> (i32, i32) {
    %c0_i32 = arith.constant 0 : i32
    %c0_i32_0 = arith.constant 0 : i32
    return %c0_i32, %arg0 : i32, i32
  }
  func.func @transform_1(%arg0: i32) -> (i32, i32) {
    %c0_i32 = arith.constant 0 : i32
    %c0_i32_0 = arith.constant 0 : i32
    return %c0_i32, %arg0 : i32, i32
  }
  func.func @transform_2(%arg0: i32) -> (i32, i32) {
    %c0_i32 = arith.constant 0 : i32
    %c0_i32_0 = arith.constant 0 : i32
    %c0_i32_1 = arith.constant 0 : i32
    return %c0_i32, %c0_i32_0 : i32, i32
  }
  func.func @transform_3(%arg0: i32) -> (i32, i32) {
    %c0_i32 = arith.constant 0 : i32
    %c0_i32_0 = arith.constant 0 : i32
    %c0_i32_1 = arith.constant 0 : i32
    return %c0_i32, %c0_i32_0 : i32, i32
  }
  func.func @transform_4(%arg0: i32) -> (i32, i32) {
    %c0_i32 = arith.constant 0 : i32
    %c0_i32_0 = arith.constant 0 : i32
    return %c0_i32, %arg0 : i32, i32
  }
}

</mosaic_0001>

<llo_original>
// kernel: tpu_custom_call.1
$region0: #{tpu_custom_call.1}
  #allocation0 [shape = 'u32[]', space=smem, size = 0x4, offset = 0x4, fixed_abs, tag = 'smem constant byte address 0x4 - core index']
  #allocation1 [shape = 'u32[144,128]{1,0:T(1,128)}', space=vmem, size = 0x12000, scoped, tag = 'internal scratch']
  %s0 = inlined_call_operand.vmem [shape: bf16[1,4096], index: 0, kind: input, shape index: {}]
  %s1 = inlined_call_operand.hbm [shape: bf16[16,4096], index: 1, kind: input, shape index: {}]
  %s2 = inlined_call_operand.vmem [shape: bf16[128,16], index: 2, kind: input, shape index: {}]
  %s3 = inlined_call_operand.vmem [shape: bf16[16,128], index: 3, kind: input, shape index: {}]
  %s4 = inlined_call_operand.hbm [shape: f32[16,4096], index: 4, kind: output, shape index: {}]
  %s5 = sld [smem:[#allocation0]]
  $region53: #{tpu_custom_call.1} parent=0
    _
  %s7 = ssub.s32 1, %s5
  %s8 = scalar_select 0, %s7, %s5
  $region1: #{tpu_custom_call.1} parent=0
    #allocation2 [shape = 'u8[131072]{0}', space=vmem, size = 0x20000, scoped, tag = 'input window, operand 1']
    #allocation3 [shape = 's32[2]{0}', space=sflag, size = 0x8, scoped, tag = 'scoped memory for tpu_custom_call.1']
    #allocation4 [shape = 's32[2]{0}', space=sflag, size = 0x8, scoped, tag = 'scoped memory for tpu_custom_call.1']
    #allocation5 [shape = 'u8[262144]{0}', space=vmem, size = 0x40000, scoped, tag = 'output window, operand 0']
    %9 = vsyncpa [#allocation3], 0
    %s10 = scalar_lea.sflag [#allocation3], 1
    %11 = vsyncpa %s10, 0
    %12 = vsyncpa [#allocation4], 0
    %s13 = scalar_lea.sflag [#allocation4], 1
    %14 = vsyncpa %s13, 0
    loop: start=0, step=1, limit=4
    $region2: #{tpu_custom_call.1} parent=1 // loop_pre_header
      _
    $region3: #{tpu_custom_call.1} parent=1 // loop_header
      %s16 = sphi 0, %s20
      %p17 = scmp.ge.s32.totalorder %s16, 4
      %s26 = sphi 0, %s28
      %s29 = sphi 0, %s26
      %s30 = sphi 0, %s29
      %s46 = sphi 0, %s30
      %s52 = sphi 0, %s54
      %s55 = sphi 0, %s52
      %s56 = sphi 0, %s55
      %s72 = sphi 0, %s56
      %s76 = sphi 0, %s76
      %s78 = sphi 0, %s76
      %s79 = sphi 0, %s78
      %s93 = sphi 0, %s79
      %s97 = sphi 0, %s97
      %s99 = sphi 0, %s97
      %s100 = sphi 0, %s99
      %s114 = sphi 0, %s100
      %s120 = sphi 0, %s122
      %s123 = sphi 0, %s120
      %s124 = sphi 0, %s123
      %s140 = sphi 0, %s124
    $region4: #{tpu_custom_call.1} parent=1 // loop_header_branch
      %19 = sbr.rel (%p17) target = $region8
    $region5: #{tpu_custom_call.1} parent=1 // loop_body
      %s21 = ssub.s32 %s16, 1
      %s22 = ssub.s32 %s16, 2
      %s23 = sadd.s32 %s16, 1
      %s24 = ssub.s32 %s16, %s23
      %p25 = scmp.eq.s32.totalorder %s24, 0
      %s27 = sadd.s32 %s26, 1
      %s28 = scalar_select %p25, %s26, %s27
      %p31 = pneg %p25
      %p32 = scmp.eq.s32.totalorder %s16, 1
      %p33 = por %p31, %p32
      %p34 = scmp.ne.s32.totalorder %s26, %s29
      %p35 = scmp.eq.s32.totalorder %s16, 0
      %p36 = por %p34, %p35
      %p37 = scmp.ne.s32.totalorder %s26, %s29
      %p38 = scmp.eq.s32.totalorder %s21, 1
      %p39 = por %p37, %p38
      %p40 = scmp.ne.s32.totalorder %s29, %s30
      %p41 = scmp.eq.s32.totalorder %s21, 0
      %p42 = por %p40, %p41
      %p43 = scmp.ne.s32.totalorder %s29, %s30
      %p44 = scmp.eq.s32.totalorder %s22, 1
      %p45 = por %p43, %p44
      %p47 = scmp.ne.s32.totalorder %s30, %s46
      %p48 = scmp.eq.s32.totalorder %s22, 0
      %p49 = por %p47, %p48
      %s50 = ssub.s32 %s16, %s23
      %p51 = scmp.eq.s32.totalorder %s50, 0
      %s53 = sadd.s32 %s52, 1
      %s54 = scalar_select %p51, %s52, %s53
      %p57 = pneg %p51
      %p58 = scmp.eq.s32.totalorder %s16, 1
      %p59 = por %p57, %p58
      %p60 = scmp.ne.s32.totalorder %s52, %s55
      %p61 = scmp.eq.s32.totalorder %s16, 0
      %p62 = por %p60, %p61
      %p63 = scmp.ne.s32.totalorder %s52, %s55
      %p64 = scmp.eq.s32.totalorder %s21, 1
      %p65 = por %p63, %p64
      %p66 = scmp.ne.s32.totalorder %s55, %s56
      %p67 = scmp.eq.s32.totalorder %s21, 0
      %p68 = por %p66, %p67
      %p69 = scmp.ne.s32.totalorder %s55, %s56
      %p70 = scmp.eq.s32.totalorder %s22, 1
      %p71 = por %p69, %p70
      %p73 = scmp.ne.s32.totalorder %s56, %s72
      %p74 = scmp.eq.s32.totalorder %s22, 0
      %p75 = por %p73, %p74
      %s77 = sadd.s32 %s76, 1
      %p80 = scmp.eq.s32.totalorder %s16, 1
      %p81 = scmp.ne.s32.totalorder %s76, %s78
      %p82 = scmp.eq.s32.totalorder %s16, 0
      %p83 = por %p81, %p82
      %p84 = scmp.ne.s32.totalorder %s76, %s78
      %p85 = scmp.eq.s32.totalorder %s21, 1
      %p86 = por %p84, %p85
      %p87 = scmp.ne.s32.totalorder %s78, %s79
      %p88 = scmp.eq.s32.totalorder %s21, 0
      %p89 = por %p87, %p88
      %p90 = scmp.ne.s32.totalorder %s78, %s79
      %p91 = scmp.eq.s32.totalorder %s22, 1
      %p92 = por %p90, %p91
      %p94 = scmp.ne.s32.totalorder %s79, %s93
      %p95 = scmp.eq.s32.totalorder %s22, 0
      %p96 = por %p94, %p95
      %s98 = sadd.s32 %s97, 1
      %p101 = scmp.eq.s32.totalorder %s16, 1
      %p102 = scmp.ne.s32.totalorder %s97, %s99
      %p103 = scmp.eq.s32.totalorder %s16, 0
      %p104 = por %p102, %p103
      %p105 = scmp.ne.s32.totalorder %s97, %s99
      %p106 = scmp.eq.s32.totalorder %s21, 1
      %p107 = por %p105, %p106
      %p108 = scmp.ne.s32.totalorder %s99, %s100
      %p109 = scmp.eq.s32.totalorder %s21, 0
      %p110 = por %p108, %p109
      %p111 = scmp.ne.s32.totalorder %s99, %s100
      %p112 = scmp.eq.s32.totalorder %s22, 1
      %p113 = por %p111, %p112
      %p115 = scmp.ne.s32.totalorder %s100, %s114
      %p116 = scmp.eq.s32.totalorder %s22, 0
      %p117 = por %p115, %p116
      %s118 = ssub.s32 %s16, %s23
      %p119 = scmp.eq.s32.totalorder %s118, 0
      %s121 = sadd.s32 %s120, 1
      %s122 = scalar_select %p119, %s120, %s121
      %p125 = pneg %p119
      %p126 = scmp.eq.s32.totalorder %s16, 1
      %p127 = por %p125, %p126
      %p128 = scmp.ne.s32.totalorder %s120, %s123
      %p129 = scmp.eq.s32.totalorder %s16, 0
      %p130 = por %p128, %p129
      %p131 = scmp.ne.s32.totalorder %s120, %s123
      %p132 = scmp.eq.s32.totalorder %s21, 1
      %p133 = por %p131, %p132
      %p134 = scmp.ne.s32.totalorder %s123, %s124
      %p135 = scmp.eq.s32.totalorder %s21, 0
      %p136 = por %p134, %p135
      %p137 = scmp.ne.s32.totalorder %s123, %s124
      %p138 = scmp.eq.s32.totalorder %s22, 1
      %p139 = por %p137, %p138
      %p141 = scmp.ne.s32.totalorder %s124, %s140
      %p142 = scmp.eq.s32.totalorder %s22, 0
      %p143 = por %p141, %p142
      %p144 = scmp.le.s32.totalorder 1, %s16
      %p145 = scmp.lt.s32.totalorder %s16, 3
      %p146 = pnand %p144, %p145
      %p147 = pneg %p146
      // Predicated region
      $region9: #{tpu_custom_call.1} parent=5 // pred_check
        _
      $region10: #{tpu_custom_call.1} parent=5 // pred_check_branch
        %149 = sbr.rel (%p146) target = $region12
      $region11: #{tpu_custom_call.1} parent=5 // pred_region
        %s150 = ssub.s32 %s16, 1
        // Predicated region
        $region13: #{tpu_custom_call.1} parent=11 // pred_check
          %p151 = pneg %p89
        $region14: #{tpu_custom_call.1} parent=11 // pred_check_branch
          %153 = sbr.rel (%p151) target = $region16
        $region15: #{tpu_custom_call.1} parent=11 // pred_region
          _
        $region16: #{tpu_custom_call.1} parent=11 // pred_fallthru
          _
        // Predicated region
        $region17: #{tpu_custom_call.1} parent=11 // pred_check
          %p154 = pneg %p110
        $region18: #{tpu_custom_call.1} parent=11 // pred_check_branch
          %156 = sbr.rel (%p154) target = $region20
        $region19: #{tpu_custom_call.1} parent=11 // pred_region
          _
        $region20: #{tpu_custom_call.1} parent=11 // pred_fallthru
          _
      $region12: #{tpu_custom_call.1} parent=5 // pred_fallthru
        _
      %p157 = scmp.lt.s32.totalorder %s16, 2
      // Predicated region
      $region21: #{tpu_custom_call.1} parent=5 // pred_check
        %p158 = pneg %p157
      $region22: #{tpu_custom_call.1} parent=5 // pred_check_branch
        %160 = sbr.rel (%p158) target = $region24
      $region23: #{tpu_custom_call.1} parent=5 // pred_region
        // Predicated region
        $region25: #{tpu_custom_call.1} parent=23 // pred_check
          %p161 = pneg %p36
        $region26: #{tpu_custom_call.1} parent=23 // pred_check_branch
          %163 = sbr.rel (%p161) target = $region28
        $region27: #{tpu_custom_call.1} parent=23 // pred_region
          %s164 = smul.u32 16, %s16
          %p165 = scmp.lt.s32.totalorder %s164, 31
          %s166 = scalar_select %p165, %s164, 31
          %s167 = scalar_lea.vmem %s0, %s166
          %s168 = smul.u32 16, %s16
        $region28: #{tpu_custom_call.1} parent=23 // pred_fallthru
          _
        // Predicated region
        $region29: #{tpu_custom_call.1} parent=23 // pred_check
          %p169 = pneg %p62
        $region30: #{tpu_custom_call.1} parent=23 // pred_check_branch
          %171 = sbr.rel (%p169) target = $region32
        $region31: #{tpu_custom_call.1} parent=23 // pred_region
          %s172 = sand.u32 %s52, 1
          %s173 = scalar_lea.sflag [#allocation3], %s172
          %s174 = sand.u32 %s52, 1
          %s175 = smul.addr %s174, 128
          %s176 = scalar_lea.vmem [#allocation2], %s175
          %s177 = smul.u32 16, %s16
          %s179 = ssub.s32 2048, 2048
          %180 = vsyncadd %s173, %s179
          %s181 = smul.addr %s177, 64
          %s182 = scalar_lea.hbm %s1, %s181
          %s183 = sshll.u32 %s176, 4
          %s184 = int_to_ptr.vmem [resolvable:$true] %s183
          %189 = dma.hbm_to_vmem [thread:$0]  %s182, 2048, %s184, %s173, 2048, 1024, 64
        $region32: #{tpu_custom_call.1} parent=23 // pred_fallthru
          _
      $region24: #{tpu_custom_call.1} parent=5 // pred_fallthru
        _
      %p190 = scmp.le.s32.totalorder 1, %s16
      %p191 = scmp.lt.s32.totalorder %s16, 3
      %p192 = pnand %p190, %p191
      %p193 = pneg %p192
      // Predicated region
      $region33: #{tpu_custom_call.1} parent=5 // pred_check
        _
      $region34: #{tpu_custom_call.1} parent=5 // pred_check_branch
        %195 = sbr.rel (%p192) target = $region36
      $region35: #{tpu_custom_call.1} parent=5 // pred_region
        %s196 = ssub.s32 %s16, 1
        %s197 = sand.u32 %s55, 1
        %s198 = scalar_lea.sflag [#allocation3], %s197
        %s199 = sand.u32 %s55, 1
        %s200 = smul.addr %s199, 128
        %s201 = scalar_lea.vmem [#allocation2], %s200
        // Predicated region
        $region37: #{tpu_custom_call.1} parent=35 // pred_check
          %p202 = pneg %p68
        $region38: #{tpu_custom_call.1} parent=35 // pred_check_branch
          %204 = sbr.rel (%p202) target = $region40
        $region39: #{tpu_custom_call.1} parent=35 // pred_region
          %205 = dma.done %s198, 2048
        $region40: #{tpu_custom_call.1} parent=35 // pred_fallthru
          _
        %s206 = smul.u32 16, %s21
        %p207 = scmp.lt.s32.totalorder %s206, 31
        %s208 = scalar_select %p207, %s206, 31
        %s209 = scalar_lea.vmem %s0, %s208
        %p210 = pneg %p42
        %p211 = pneg %p39
        %s212 = sand.u32 %s55, 1
        %s213 = scalar_lea.sflag [#allocation3], %s212
        %s214 = sand.u32 %s55, 1
        %s215 = smul.addr %s214, 128
        %s216 = scalar_lea.vmem [#allocation2], %s215
        %p217 = pneg %p68
        %p218 = pneg %p65
        %p219 = pneg %p89
        %p220 = pneg %p86
        %p221 = pneg %p110
        %p222 = pneg %p107
        %p223 = pneg %p136
        %p224 = pneg %p133
        %s225 = sand.u32 %s123, 1
        %s226 = scalar_lea.sflag [#allocation4], %s225
        %s227 = sand.u32 %s123, 1
        %s228 = smul.addr %s227, 256
        %s229 = scalar_lea.vmem [#allocation5], %s228
        %s230 = smul.u32 16, %s21
        %p231 = scmp.lt.s32.totalorder %s230, 31
        %s232 = scalar_select %p231, %s230, 31
        %s233 = scalar_lea.vmem %s0, %s232
        %s234 = smul.u32 16, %s21
        %s235 = smul.u32 16, %s21
        %s236 = smul.u32 16, %s21
        %v238 = vld [vmem:[%s2] sm:$0xf]
        %v239 = vld [vmem:[%s2 + $0x4] sm:$0xf]
        %v240 = vld [vmem:[%s2 + $0x8] sm:$0xf]
        %v241 = vld [vmem:[%s2 + $0xc] sm:$0xf]
        %v242 = vld [vmem:[%s2 + $0x10] sm:$0xf]
        %v243 = vld [vmem:[%s2 + $0x14] sm:$0xf]
        %v244 = vld [vmem:[%s2 + $0x18] sm:$0xf]
        %v245 = vld [vmem:[%s2 + $0x1c] sm:$0xf]
        %v246 = vld [vmem:[%s2 + $0x20] sm:$0xf]
        %v247 = vld [vmem:[%s2 + $0x24] sm:$0xf]
        %v248 = vld [vmem:[%s2 + $0x28] sm:$0xf]
        %v249 = vld [vmem:[%s2 + $0x2c] sm:$0xf]
        %v250 = vld [vmem:[%s2 + $0x30] sm:$0xf]
        %v251 = vld [vmem:[%s2 + $0x34] sm:$0xf]
        %v252 = vld [vmem:[%s2 + $0x38] sm:$0xf]
        %v253 = vld [vmem:[%s2 + $0x3c] sm:$0xf]
        %v254 = vld [vmem:[%s201] sm:$0xff]
        %v255 = vld [vmem:[%s201 + $0x8] sm:$0xff]
        %v256 = vld [vmem:[%s201 + $0x10] sm:$0xff]
        %v257 = vld [vmem:[%s201 + $0x18] sm:$0xff]
        %v258 = vld [vmem:[%s201 + $0x20] sm:$0xff]
        %v259 = vld [vmem:[%s201 + $0x28] sm:$0xff]
        %v260 = vld [vmem:[%s201 + $0x30] sm:$0xff]
        %v261 = vld [vmem:[%s201 + $0x38] sm:$0xff]
        %v262 = vld [vmem:[%s201 + $0x40] sm:$0xff]
        %v263 = vld [vmem:[%s201 + $0x48] sm:$0xff]
        %v264 = vld [vmem:[%s201 + $0x50] sm:$0xff]
        %v265 = vld [vmem:[%s201 + $0x58] sm:$0xff]
        %v266 = vld [vmem:[%s201 + $0x60] sm:$0xff]
        %v267 = vld [vmem:[%s201 + $0x68] sm:$0xff]
        %v268 = vld [vmem:[%s201 + $0x70] sm:$0xff]
        %v269 = vld [vmem:[%s201 + $0x78] sm:$0xff]
        %v286 = vunpack.c.l.b16 %v238
        %v287 = vunpack.c.l.b16 %v239
        %v288 = vunpack.c.l.b16 %v240
        %v289 = vunpack.c.l.b16 %v241
        %v290 = vunpack.c.l.b16 %v242
        %v291 = vunpack.c.l.b16 %v243
        %v292 = vunpack.c.l.b16 %v244
        %v293 = vunpack.c.l.b16 %v245
        %v294 = vunpack.c.l.b16 %v246
        %v295 = vunpack.c.l.b16 %v247
        %v296 = vunpack.c.l.b16 %v248
        %v297 = vunpack.c.l.b16 %v249
        %v298 = vunpack.c.l.b16 %v250
        %v299 = vunpack.c.l.b16 %v251
        %v300 = vunpack.c.l.b16 %v252
        %v301 = vunpack.c.l.b16 %v253
        %v302 = vpack.c.b16 %v287, %v286
        %v303 = vpack.c.b16 %v289, %v288
        %v304 = vpack.c.b16 %v291, %v290
        %v305 = vpack.c.b16 %v293, %v292
        %v306 = vpack.c.b16 %v295, %v294
        %v307 = vpack.c.b16 %v297, %v296
        %v308 = vpack.c.b16 %v299, %v298
        %v309 = vpack.c.b16 %v301, %v300
        %v326 = vunpack.c.l.b16 %v254
        %v327 = vunpack.c.h.b16 %v254
        %v328 = vunpack.c.l.b16 %v255
        %v329 = vunpack.c.h.b16 %v255
        %v330 = vunpack.c.l.b16 %v256
        %v331 = vunpack.c.h.b16 %v256
        %v332 = vunpack.c.l.b16 %v257
        %v333 = vunpack.c.h.b16 %v257
        %v334 = vunpack.c.l.b16 %v258
        %v335 = vunpack.c.h.b16 %v258
        %v336 = vunpack.c.l.b16 %v259
        %v337 = vunpack.c.h.b16 %v259
        %v338 = vunpack.c.l.b16 %v260
        %v339 = vunpack.c.h.b16 %v260
        %v340 = vunpack.c.l.b16 %v261
        %v341 = vunpack.c.h.b16 %v261
        %v342 = vunpack.c.l.b16 %v262
        %v343 = vunpack.c.h.b16 %v262
        %v344 = vunpack.c.l.b16 %v263
        %v345 = vunpack.c.h.b16 %v263
        %v346 = vunpack.c.l.b16 %v264
        %v347 = vunpack.c.h.b16 %v264
        %v348 = vunpack.c.l.b16 %v265
        %v349 = vunpack.c.h.b16 %v265
        %v350 = vunpack.c.l.b16 %v266
        %v351 = vunpack.c.h.b16 %v266
        %v352 = vunpack.c.l.b16 %v267
        %v353 = vunpack.c.h.b16 %v267
        %v354 = vunpack.c.l.b16 %v268
        %v355 = vunpack.c.h.b16 %v268
        %v356 = vunpack.c.l.b16 %v269
        %v357 = vunpack.c.h.b16 %v269
        %v358 = vpack.c.b16 %v342, %v326
        %v359 = vpack.c.b16 %v343, %v327
        %v360 = vpack.c.b16 %v344, %v328
        %v361 = vpack.c.b16 %v345, %v329
        %v362 = vpack.c.b16 %v346, %v330
        %v363 = vpack.c.b16 %v347, %v331
        %v364 = vpack.c.b16 %v348, %v332
        %v365 = vpack.c.b16 %v349, %v333
        %v366 = vpack.c.b16 %v350, %v334
        %v367 = vpack.c.b16 %v351, %v335
        %v368 = vpack.c.b16 %v352, %v336
        %v369 = vpack.c.b16 %v353, %v337
        %v370 = vpack.c.b16 %v354, %v338
        %v371 = vpack.c.b16 %v355, %v339
        %v372 = vpack.c.b16 %v356, %v340
        %v373 = vpack.c.b16 %v357, %v341
        %vm390 = vcmask 130048
        %v392 = vsel %vm390, %v302, 0
        %v395 = vsel %vm390, %v303, 0
        %v398 = vsel %vm390, %v304, 0
        %v401 = vsel %vm390, %v305, 0
        %v404 = vsel %vm390, %v306, 0
        %v407 = vsel %vm390, %v307, 0
        %v410 = vsel %vm390, %v308, 0
        %v413 = vsel %vm390, %v309, 0
        %415 = vmatprep.subr.bf16.mxu0 0
        %416 = vmatpush1.bf16.msra.mxu0 0
        %417 = vmatprep.subr.bf16.mxu0 0
        %418 = vmatpush1.bf16.msra.mxu0 0
        %419 = vmatprep.subr.bf16.mxu0 0
        %420 = vmatpush1.bf16.msra.mxu0 0
        %421 = vmatprep.subr.bf16.mxu0 0
        %422 = vmatpush1.bf16.msra.mxu0 0
        %423 = vmatprep.subr.bf16.mxu0 0
        %424 = vmatpush1.bf16.msra.mxu0 0
        %425 = vmatprep.subr.bf16.mxu0 0
        %426 = vmatpush1.bf16.msra.mxu0 0
        %427 = vmatprep.subr.bf16.mxu0 0
        %428 = vmatpush1.bf16.msra.mxu0 0
        %429 = vmatprep.subr.bf16.mxu0 %v359
        %430 = vmatpush1.bf16.msra.mxu0 %v358
        %431 = vmatprep.subr.bf16.mxu0 0
        %432 = vmatpush2.bf16.msra.mxu0 0
        %433 = vmatprep.subr.bf16.mxu0 0
        %434 = vmatpush2.bf16.msra.mxu0 0
        %435 = vmatprep.subr.bf16.mxu0 0
        %436 = vmatpush2.bf16.msra.mxu0 0
        %437 = vmatprep.subr.bf16.mxu0 0
        %438 = vmatpush2.bf16.msra.mxu0 0
        %439 = vmatprep.subr.bf16.mxu0 0
        %440 = vmatpush2.bf16.msra.mxu0 0
        %441 = vmatprep.subr.bf16.mxu0 0
        %442 = vmatpush2.bf16.msra.mxu0 0
        %443 = vmatprep.subr.bf16.mxu0 0
        %444 = vmatpush2.bf16.msra.mxu0 0
        %445 = vmatprep.subr.bf16.mxu0 0
        %446 = vmatpush2.bf16.msra.mxu0 0
        %447 = vmatprep.mubr.bf16.mxu0 0
        %448 = vmatmul.mubr.bf16.gmra.mxu0 %v392
        %v449 = vpop.f32.mrf.mxu0
        %v450 = vadd.f32 0.0, %v449
        %v451 = vpop.f32.mrf.mxu0
        %v452 = vadd.f32 0.0, %v451
        %v453 = vpop.f32.mrf.mxu0
        %v454 = vadd.f32 0.0, %v453
        %v455 = vpop.f32.mrf.mxu0
        %v456 = vadd.f32 0.0, %v455
        %457 = vmatprep.mubr.bf16.mxu0 0
        %458 = vmatmul.mubr.bf16.gmra.mxu0 %v395
        %v459 = vpop.f32.mrf.mxu0
        %v460 = vadd.f32 0.0, %v459
        %v461 = vpop.f32.mrf.mxu0
        %v462 = vadd.f32 0.0, %v461
        %v463 = vpop.f32.mrf.mxu0
        %v464 = vadd.f32 0.0, %v463
        %v465 = vpop.f32.mrf.mxu0
        %v466 = vadd.f32 0.0, %v465
        %467 = vmatprep.mubr.bf16.mxu0 0
        %468 = vmatmul.mubr.bf16.gmra.mxu0 %v398
        %v469 = vpop.f32.mrf.mxu0
        %v470 = vadd.f32 0.0, %v469
        %v471 = vpop.f32.mrf.mxu0
        %v472 = vadd.f32 0.0, %v471
        %v473 = vpop.f32.mrf.mxu0
        %v474 = vadd.f32 0.0, %v473
        %v475 = vpop.f32.mrf.mxu0
        %v476 = vadd.f32 0.0, %v475
        %477 = vmatprep.mubr.bf16.mxu0 0
        %478 = vmatmul.mubr.bf16.gmra.mxu0 %v401
        %v479 = vpop.f32.mrf.mxu0
        %v480 = vadd.f32 0.0, %v479
        %v481 = vpop.f32.mrf.mxu0
        %v482 = vadd.f32 0.0, %v481
        %v483 = vpop.f32.mrf.mxu0
        %v484 = vadd.f32 0.0, %v483
        %v485 = vpop.f32.mrf.mxu0
        %v486 = vadd.f32 0.0, %v485
        %487 = vmatprep.mubr.bf16.mxu0 0
        %488 = vmatmul.mubr.bf16.gmra.mxu0 %v404
        %v489 = vpop.f32.mrf.mxu0
        %v490 = vadd.f32 0.0, %v489
        %v491 = vpop.f32.mrf.mxu0
        %v492 = vadd.f32 0.0, %v491
        %v493 = vpop.f32.mrf.mxu0
        %v494 = vadd.f32 0.0, %v493
        %v495 = vpop.f32.mrf.mxu0
        %v496 = vadd.f32 0.0, %v495
        %497 = vmatprep.mubr.bf16.mxu0 0
        %498 = vmatmul.mubr.bf16.gmra.mxu0 %v407
        %v499 = vpop.f32.mrf.mxu0
        %v500 = vadd.f32 0.0, %v499
        %v501 = vpop.f32.mrf.mxu0
        %v502 = vadd.f32 0.0, %v501
        %v503 = vpop.f32.mrf.mxu0
        %v504 = vadd.f32 0.0, %v503
        %v505 = vpop.f32.mrf.mxu0
        %v506 = vadd.f32 0.0, %v505
        %507 = vmatprep.mubr.bf16.mxu0 0
        %508 = vmatmul.mubr.bf16.gmra.mxu0 %v410
        %v509 = vpop.f32.mrf.mxu0
        %v510 = vadd.f32 0.0, %v509
        %v511 = vpop.f32.mrf.mxu0
        %v512 = vadd.f32 0.0, %v511
        %v513 = vpop.f32.mrf.mxu0
        %v514 = vadd.f32 0.0, %v513
        %v515 = vpop.f32.mrf.mxu0
        %v516 = vadd.f32 0.0, %v515
        %517 = vmatprep.mubr.bf16.mxu0 0
        %518 = vmatmul.mubr.bf16.gmra.mxu0 %v413
        %v519 = vpop.f32.mrf.mxu0
        %v520 = vadd.f32 0.0, %v519
        %v521 = vpop.f32.mrf.mxu0
        %v522 = vadd.f32 0.0, %v521
        %v523 = vpop.f32.mrf.mxu0
        %v524 = vadd.f32 0.0, %v523
        %v525 = vpop.f32.mrf.mxu0
        %v526 = vadd.f32 0.0, %v525
        %527 = vdwg.mxu0
        %528 = vmatprep.subr.bf16.mxu0 0
        %529 = vmatpush1.bf16.msra.mxu0 0
        %530 = vmatprep.subr.bf16.mxu0 0
        %531 = vmatpush1.bf16.msra.mxu0 0
        %532 = vmatprep.subr.bf16.mxu0 0
        %533 = vmatpush1.bf16.msra.mxu0 0
        %534 = vmatprep.subr.bf16.mxu0 0
        %535 = vmatpush1.bf16.msra.mxu0 0
        %536 = vmatprep.subr.bf16.mxu0 0
        %537 = vmatpush1.bf16.msra.mxu0 0
        %538 = vmatprep.subr.bf16.mxu0 0
        %539 = vmatpush1.bf16.msra.mxu0 0
        %540 = vmatprep.subr.bf16.mxu0 0
        %541 = vmatpush1.bf16.msra.mxu0 0
        %542 = vmatprep.subr.bf16.mxu0 %v361
        %543 = vmatpush1.bf16.msra.mxu0 %v360
        %544 = vmatprep.subr.bf16.mxu0 0
        %545 = vmatpush2.bf16.msra.mxu0 0
        %546 = vmatprep.subr.bf16.mxu0 0
        %547 = vmatpush2.bf16.msra.mxu0 0
        %548 = vmatprep.subr.bf16.mxu0 0
        %549 = vmatpush2.bf16.msra.mxu0 0
        %550 = vmatprep.subr.bf16.mxu0 0
        %551 = vmatpush2.bf16.msra.mxu0 0
        %552 = vmatprep.subr.bf16.mxu0 0
        %553 = vmatpush2.bf16.msra.mxu0 0
        %554 = vmatprep.subr.bf16.mxu0 0
        %555 = vmatpush2.bf16.msra.mxu0 0
        %556 = vmatprep.subr.bf16.mxu0 0
        %557 = vmatpush2.bf16.msra.mxu0 0
        %558 = vmatprep.subr.bf16.mxu0 0
        %559 = vmatpush2.bf16.msra.mxu0 0
        %560 = vmatprep.mubr.bf16.mxu0 0
        %561 = vmatmul.mubr.bf16.gmra.mxu0 %v392
        %v562 = vpop.f32.mrf.mxu0
        %v563 = vadd.f32 0.0, %v562
        %v564 = vpop.f32.mrf.mxu0
        %v565 = vadd.f32 0.0, %v564
        %v566 = vpop.f32.mrf.mxu0
        %v567 = vadd.f32 0.0, %v566
        %v568 = vpop.f32.mrf.mxu0
        %v569 = vadd.f32 0.0, %v568
        %570 = vmatprep.mubr.bf16.mxu0 0
        %571 = vmatmul.mubr.bf16.gmra.mxu0 %v395
        %v572 = vpop.f32.mrf.mxu0
        %v573 = vadd.f32 0.0, %v572
        %v574 = vpop.f32.mrf.mxu0
        %v575 = vadd.f32 0.0, %v574
        %v576 = vpop.f32.mrf.mxu0
        %v577 = vadd.f32 0.0, %v576
        %v578 = vpop.f32.mrf.mxu0
        %v579 = vadd.f32 0.0, %v578
        %580 = vmatprep.mubr.bf16.mxu0 0
        %581 = vmatmul.mubr.bf16.gmra.mxu0 %v398
        %v582 = vpop.f32.mrf.mxu0
        %v583 = vadd.f32 0.0, %v582
        %v584 = vpop.f32.mrf.mxu0
        %v585 = vadd.f32 0.0, %v584
        %v586 = vpop.f32.mrf.mxu0
        %v587 = vadd.f32 0.0, %v586
        %v588 = vpop.f32.mrf.mxu0
        %v589 = vadd.f32 0.0, %v588
        %590 = vmatprep.mubr.bf16.mxu0 0
        %591 = vmatmul.mubr.bf16.gmra.mxu0 %v401
        %v592 = vpop.f32.mrf.mxu0
        %v593 = vadd.f32 0.0, %v592
        %v594 = vpop.f32.mrf.mxu0
        %v595 = vadd.f32 0.0, %v594
        %v596 = vpop.f32.mrf.mxu0
        %v597 = vadd.f32 0.0, %v596
        %v598 = vpop.f32.mrf.mxu0
        %v599 = vadd.f32 0.0, %v598
        %600 = vmatprep.mubr.bf16.mxu0 0
        %601 = vmatmul.mubr.bf16.gmra.mxu0 %v404
        %v602 = vpop.f32.mrf.mxu0
        %v603 = vadd.f32 0.0, %v602
        %v604 = vpop.f32.mrf.mxu0
        %v605 = vadd.f32 0.0, %v604
        %v606 = vpop.f32.mrf.mxu0
        %v607 = vadd.f32 0.0, %v606
        %v608 = vpop.f32.mrf.mxu0
        %v609 = vadd.f32 0.0, %v608
        %610 = vmatprep.mubr.bf16.mxu0 0
        %611 = vmatmul.mubr.bf16.gmra.mxu0 %v407
        %v612 = vpop.f32.mrf.mxu0
        %v613 = vadd.f32 0.0, %v612
        %v614 = vpop.f32.mrf.mxu0
        %v615 = vadd.f32 0.0, %v614
        %v616 = vpop.f32.mrf.mxu0
        %v617 = vadd.f32 0.0, %v616
        %v618 = vpop.f32.mrf.mxu0
        %v619 = vadd.f32 0.0, %v618
        %620 = vmatprep.mubr.bf16.mxu0 0
        %621 = vmatmul.mubr.bf16.gmra.mxu0 %v410
        %v622 = vpop.f32.mrf.mxu0
        %v623 = vadd.f32 0.0, %v622
        %v624 = vpop.f32.mrf.mxu0
        %v625 = vadd.f32 0.0, %v624
        %v626 = vpop.f32.mrf.mxu0
        %v627 = vadd.f32 0.0, %v626
        %v628 = vpop.f32.mrf.mxu0
        %v629 = vadd.f32 0.0, %v628
        %630 = vmatprep.mubr.bf16.mxu0 0
        %631 = vmatmul.mubr.bf16.gmra.mxu0 %v413
        %v632 = vpop.f32.mrf.mxu0
        %v633 = vadd.f32 0.0, %v632
        %v634 = vpop.f32.mrf.mxu0
        %v635 = vadd.f32 0.0, %v634
        %v636 = vpop.f32.mrf.mxu0
        %v637 = vadd.f32 0.0, %v636
        %v638 = vpop.f32.mrf.mxu0
        %v639 = vadd.f32 0.0, %v638
        %640 = vdwg.mxu0
        %641 = vmatprep.subr.bf16.mxu0 0
        %642 = vmatpush1.bf16.msra.mxu0 0
        %643 = vmatprep.subr.bf16.mxu0 0
        %644 = vmatpush1.bf16.msra.mxu0 0
        %645 = vmatprep.subr.bf16.mxu0 0
        %646 = vmatpush1.bf16.msra.mxu0 0
        %647 = vmatprep.subr.bf16.mxu0 0
        %648 = vmatpush1.bf16.msra.mxu0 0
        %649 = vmatprep.subr.bf16.mxu0 0
        %650 = vmatpush1.bf16.msra.mxu0 0
        %651 = vmatprep.subr.bf16.mxu0 0
        %652 = vmatpush1.bf16.msra.mxu0 0
        %653 = vmatprep.subr.bf16.mxu0 0
        %654 = vmatpush1.bf16.msra.mxu0 0
        %655 = vmatprep.subr.bf16.mxu0 %v363
        %656 = vmatpush1.bf16.msra.mxu0 %v362
        %657 = vmatprep.subr.bf16.mxu0 0
        %658 = vmatpush2.bf16.msra.mxu0 0
        %659 = vmatprep.subr.bf16.mxu0 0
        %660 = vmatpush2.bf16.msra.mxu0 0
        %661 = vmatprep.subr.bf16.mxu0 0
        %662 = vmatpush2.bf16.msra.mxu0 0
        %663 = vmatprep.subr.bf16.mxu0 0
        %664 = vmatpush2.bf16.msra.mxu0 0
        %665 = vmatprep.subr.bf16.mxu0 0
        %666 = vmatpush2.bf16.msra.mxu0 0
        %667 = vmatprep.subr.bf16.mxu0 0
        %668 = vmatpush2.bf16.msra.mxu0 0
        %669 = vmatprep.subr.bf16.mxu0 0
        %670 = vmatpush2.bf16.msra.mxu0 0
        %671 = vmatprep.subr.bf16.mxu0 0
        %672 = vmatpush2.bf16.msra.mxu0 0
        %673 = vmatprep.mubr.bf16.mxu0 0
        %674 = vmatmul.mubr.bf16.gmra.mxu0 %v392
        %v675 = vpop.f32.mrf.mxu0
        %v676 = vadd.f32 0.0, %v675
        %v677 = vpop.f32.mrf.mxu0
        %v678 = vadd.f32 0.0, %v677
        %v679 = vpop.f32.mrf.mxu0
        %v680 = vadd.f32 0.0, %v679
        %v681 = vpop.f32.mrf.mxu0
        %v682 = vadd.f32 0.0, %v681
        %683 = vmatprep.mubr.bf16.mxu0 0
        %684 = vmatmul.mubr.bf16.gmra.mxu0 %v395
        %v685 = vpop.f32.mrf.mxu0
        %v686 = vadd.f32 0.0, %v685
        %v687 = vpop.f32.mrf.mxu0
        %v688 = vadd.f32 0.0, %v687
        %v689 = vpop.f32.mrf.mxu0
        %v690 = vadd.f32 0.0, %v689
        %v691 = vpop.f32.mrf.mxu0
        %v692 = vadd.f32 0.0, %v691
        %693 = vmatprep.mubr.bf16.mxu0 0
        %694 = vmatmul.mubr.bf16.gmra.mxu0 %v398
        %v695 = vpop.f32.mrf.mxu0
        %v696 = vadd.f32 0.0, %v695
        %v697 = vpop.f32.mrf.mxu0
        %v698 = vadd.f32 0.0, %v697
        %v699 = vpop.f32.mrf.mxu0
        %v700 = vadd.f32 0.0, %v699
        %v701 = vpop.f32.mrf.mxu0
        %v702 = vadd.f32 0.0, %v701
        %703 = vmatprep.mubr.bf16.mxu0 0
        %704 = vmatmul.mubr.bf16.gmra.mxu0 %v401
        %v705 = vpop.f32.mrf.mxu0
        %v706 = vadd.f32 0.0, %v705
        %v707 = vpop.f32.mrf.mxu0
        %v708 = vadd.f32 0.0, %v707
        %v709 = vpop.f32.mrf.mxu0
        %v710 = vadd.f32 0.0, %v709
        %v711 = vpop.f32.mrf.mxu0
        %v712 = vadd.f32 0.0, %v711
        %713 = vmatprep.mubr.bf16.mxu0 0
        %714 = vmatmul.mubr.bf16.gmra.mxu0 %v404
        %v715 = vpop.f32.mrf.mxu0
        %v716 = vadd.f32 0.0, %v715
        %v717 = vpop.f32.mrf.mxu0
        %v718 = vadd.f32 0.0, %v717
        %v719 = vpop.f32.mrf.mxu0
        %v720 = vadd.f32 0.0, %v719
        %v721 = vpop.f32.mrf.mxu0
        %v722 = vadd.f32 0.0, %v721
        %723 = vmatprep.mubr.bf16.mxu0 0
        %724 = vmatmul.mubr.bf16.gmra.mxu0 %v407
        %v725 = vpop.f32.mrf.mxu0
        %v726 = vadd.f32 0.0, %v725
        %v727 = vpop.f32.mrf.mxu0
        %v728 = vadd.f32 0.0, %v727
        %v729 = vpop.f32.mrf.mxu0
        %v730 = vadd.f32 0.0, %v729
        %v731 = vpop.f32.mrf.mxu0
        %v732 = vadd.f32 0.0, %v731
        %733 = vmatprep.mubr.bf16.mxu0 0
        %734 = vmatmul.mubr.bf16.gmra.mxu0 %v410
        %v735 = vpop.f32.mrf.mxu0
        %v736 = vadd.f32 0.0, %v735
        %v737 = vpop.f32.mrf.mxu0
        %v738 = vadd.f32 0.0, %v737
        %v739 = vpop.f32.mrf.mxu0
        %v740 = vadd.f32 0.0, %v739
        %v741 = vpop.f32.mrf.mxu0
        %v742 = vadd.f32 0.0, %v741
        %743 = vmatprep.mubr.bf16.mxu0 0
        %744 = vmatmul.mubr.bf16.gmra.mxu0 %v413
        %v745 = vpop.f32.mrf.mxu0
        %v746 = vadd.f32 0.0, %v745
        %v747 = vpop.f32.mrf.mxu0
        %v748 = vadd.f32 0.0, %v747
        %v749 = vpop.f32.mrf.mxu0
        %v750 = vadd.f32 0.0, %v749
        %v751 = vpop.f32.mrf.mxu0
        %v752 = vadd.f32 0.0, %v751
        %753 = vdwg.mxu0
        %754 = vmatprep.subr.bf16.mxu0 0
        %755 = vmatpush1.bf16.msra.mxu0 0
        %756 = vmatprep.subr.bf16.mxu0 0
        %757 = vmatpush1.bf16.msra.mxu0 0
        %758 = vmatprep.subr.bf16.mxu0 0
        %759 = vmatpush1.bf16.msra.mxu0 0
        %760 = vmatprep.subr.bf16.mxu0 0
        %761 = vmatpush1.bf16.msra.mxu0 0
        %762 = vmatprep.subr.bf16.mxu0 0
        %763 = vmatpush1.bf16.msra.mxu0 0
        %764 = vmatprep.subr.bf16.mxu0 0
        %765 = vmatpush1.bf16.msra.mxu0 0
        %766 = vmatprep.subr.bf16.mxu0 0
        %767 = vmatpush1.bf16.msra.mxu0 0
        %768 = vmatprep.subr.bf16.mxu0 %v365
        %769 = vmatpush1.bf16.msra.mxu0 %v364
        %770 = vmatprep.subr.bf16.mxu0 0
        %771 = vmatpush2.bf16.msra.mxu0 0
        %772 = vmatprep.subr.bf16.mxu0 0
        %773 = vmatpush2.bf16.msra.mxu0 0
        %774 = vmatprep.subr.bf16.mxu0 0
        %775 = vmatpush2.bf16.msra.mxu0 0
        %776 = vmatprep.subr.bf16.mxu0 0
        %777 = vmatpush2.bf16.msra.mxu0 0
        %778 = vmatprep.subr.bf16.mxu0 0
        %779 = vmatpush2.bf16.msra.mxu0 0
        %780 = vmatprep.subr.bf16.mxu0 0
        %781 = vmatpush2.bf16.msra.mxu0 0
        %782 = vmatprep.subr.bf16.mxu0 0
        %783 = vmatpush2.bf16.msra.mxu0 0
        %784 = vmatprep.subr.bf16.mxu0 0
        %785 = vmatpush2.bf16.msra.mxu0 0
        %786 = vmatprep.mubr.bf16.mxu0 0
        %787 = vmatmul.mubr.bf16.gmra.mxu0 %v392
        %v788 = vpop.f32.mrf.mxu0
        %v789 = vadd.f32 0.0, %v788
        %v790 = vpop.f32.mrf.mxu0
        %v791 = vadd.f32 0.0, %v790
        %v792 = vpop.f32.mrf.mxu0
        %v793 = vadd.f32 0.0, %v792
        %v794 = vpop.f32.mrf.mxu0
        %v795 = vadd.f32 0.0, %v794
        %796 = vmatprep.mubr.bf16.mxu0 0
        %797 = vmatmul.mubr.bf16.gmra.mxu0 %v395
        %v798 = vpop.f32.mrf.mxu0
        %v799 = vadd.f32 0.0, %v798
        %v800 = vpop.f32.mrf.mxu0
        %v801 = vadd.f32 0.0, %v800
        %v802 = vpop.f32.mrf.mxu0
        %v803 = vadd.f32 0.0, %v802
        %v804 = vpop.f32.mrf.mxu0
        %v805 = vadd.f32 0.0, %v804
        %806 = vmatprep.mubr.bf16.mxu0 0
        %807 = vmatmul.mubr.bf16.gmra.mxu0 %v398
        %v808 = vpop.f32.mrf.mxu0
        %v809 = vadd.f32 0.0, %v808
        %v810 = vpop.f32.mrf.mxu0
        %v811 = vadd.f32 0.0, %v810
        %v812 = vpop.f32.mrf.mxu0
        %v813 = vadd.f32 0.0, %v812
        %v814 = vpop.f32.mrf.mxu0
        %v815 = vadd.f32 0.0, %v814
        %816 = vmatprep.mubr.bf16.mxu0 0
        %817 = vmatmul.mubr.bf16.gmra.mxu0 %v401
        %v818 = vpop.f32.mrf.mxu0
        %v819 = vadd.f32 0.0, %v818
        %v820 = vpop.f32.mrf.mxu0
        %v821 = vadd.f32 0.0, %v820
        %v822 = vpop.f32.mrf.mxu0
        %v823 = vadd.f32 0.0, %v822
        %v824 = vpop.f32.mrf.mxu0
        %v825 = vadd.f32 0.0, %v824
        %826 = vmatprep.mubr.bf16.mxu0 0
        %827 = vmatmul.mubr.bf16.gmra.mxu0 %v404
        %v828 = vpop.f32.mrf.mxu0
        %v829 = vadd.f32 0.0, %v828
        %v830 = vpop.f32.mrf.mxu0
        %v831 = vadd.f32 0.0, %v830
        %v832 = vpop.f32.mrf.mxu0
        %v833 = vadd.f32 0.0, %v832
        %v834 = vpop.f32.mrf.mxu0
        %v835 = vadd.f32 0.0, %v834
        %836 = vmatprep.mubr.bf16.mxu0 0
        %837 = vmatmul.mubr.bf16.gmra.mxu0 %v407
        %v838 = vpop.f32.mrf.mxu0
        %v839 = vadd.f32 0.0, %v838
        %v840 = vpop.f32.mrf.mxu0
        %v841 = vadd.f32 0.0, %v840
        %v842 = vpop.f32.mrf.mxu0
        %v843 = vadd.f32 0.0, %v842
        %v844 = vpop.f32.mrf.mxu0
        %v845 = vadd.f32 0.0, %v844
        %846 = vmatprep.mubr.bf16.mxu0 0
        %847 = vmatmul.mubr.bf16.gmra.mxu0 %v410
        %v848 = vpop.f32.mrf.mxu0
        %v849 = vadd.f32 0.0, %v848
        %v850 = vpop.f32.mrf.mxu0
        %v851 = vadd.f32 0.0, %v850
        %v852 = vpop.f32.mrf.mxu0
        %v853 = vadd.f32 0.0, %v852
        %v854 = vpop.f32.mrf.mxu0
        %v855 = vadd.f32 0.0, %v854
        %856 = vmatprep.mubr.bf16.mxu0 0
        %857 = vmatmul.mubr.bf16.gmra.mxu0 %v413
        %v858 = vpop.f32.mrf.mxu0
        %v859 = vadd.f32 0.0, %v858
        %v860 = vpop.f32.mrf.mxu0
        %v861 = vadd.f32 0.0, %v860
        %v862 = vpop.f32.mrf.mxu0
        %v863 = vadd.f32 0.0, %v862
        %v864 = vpop.f32.mrf.mxu0
        %v865 = vadd.f32 0.0, %v864
        %866 = vdwg.mxu0
        %867 = vmatprep.subr.bf16.mxu0 0
        %868 = vmatpush1.bf16.msra.mxu0 0
        %869 = vmatprep.subr.bf16.mxu0 0
        %870 = vmatpush1.bf16.msra.mxu0 0
        %871 = vmatprep.subr.bf16.mxu0 0
        %872 = vmatpush1.bf16.msra.mxu0 0
        %873 = vmatprep.subr.bf16.mxu0 0
        %874 = vmatpush1.bf16.msra.mxu0 0
        %875 = vmatprep.subr.bf16.mxu0 0
        %876 = vmatpush1.bf16.msra.mxu0 0
        %877 = vmatprep.subr.bf16.mxu0 0
        %878 = vmatpush1.bf16.msra.mxu0 0
        %879 = vmatprep.subr.bf16.mxu0 0
        %880 = vmatpush1.bf16.msra.mxu0 0
        %881 = vmatprep.subr.bf16.mxu0 %v367
        %882 = vmatpush1.bf16.msra.mxu0 %v366
        %883 = vmatprep.subr.bf16.mxu0 0
        %884 = vmatpush2.bf16.msra.mxu0 0
        %885 = vmatprep.subr.bf16.mxu0 0
        %886 = vmatpush2.bf16.msra.mxu0 0
        %887 = vmatprep.subr.bf16.mxu0 0
        %888 = vmatpush2.bf16.msra.mxu0 0
        %889 = vmatprep.subr.bf16.mxu0 0
        %890 = vmatpush2.bf16.msra.mxu0 0
        %891 = vmatprep.subr.bf16.mxu0 0
        %892 = vmatpush2.bf16.msra.mxu0 0
        %893 = vmatprep.subr.bf16.mxu0 0
        %894 = vmatpush2.bf16.msra.mxu0 0
        %895 = vmatprep.subr.bf16.mxu0 0
        %896 = vmatpush2.bf16.msra.mxu0 0
        %897 = vmatprep.subr.bf16.mxu0 0
        %898 = vmatpush2.bf16.msra.mxu0 0
        %899 = vmatprep.mubr.bf16.mxu0 0
        %900 = vmatmul.mubr.bf16.gmra.mxu0 %v392
        %v901 = vpop.f32.mrf.mxu0
        %v902 = vadd.f32 0.0, %v901
        %v903 = vpop.f32.mrf.mxu0
        %v904 = vadd.f32 0.0, %v903
        %v905 = vpop.f32.mrf.mxu0
        %v906 = vadd.f32 0.0, %v905
        %v907 = vpop.f32.mrf.mxu0
        %v908 = vadd.f32 0.0, %v907
        %909 = vmatprep.mubr.bf16.mxu0 0
        %910 = vmatmul.mubr.bf16.gmra.mxu0 %v395
        %v911 = vpop.f32.mrf.mxu0
        %v912 = vadd.f32 0.0, %v911
        %v913 = vpop.f32.mrf.mxu0
        %v914 = vadd.f32 0.0, %v913
        %v915 = vpop.f32.mrf.mxu0
        %v916 = vadd.f32 0.0, %v915
        %v917 = vpop.f32.mrf.mxu0
        %v918 = vadd.f32 0.0, %v917
        %919 = vmatprep.mubr.bf16.mxu0 0
        %920 = vmatmul.mubr.bf16.gmra.mxu0 %v398
        %v921 = vpop.f32.mrf.mxu0
        %v922 = vadd.f32 0.0, %v921
        %v923 = vpop.f32.mrf.mxu0
        %v924 = vadd.f32 0.0, %v923
        %v925 = vpop.f32.mrf.mxu0
        %v926 = vadd.f32 0.0, %v925
        %v927 = vpop.f32.mrf.mxu0
        %v928 = vadd.f32 0.0, %v927
        %929 = vmatprep.mubr.bf16.mxu0 0
        %930 = vmatmul.mubr.bf16.gmra.mxu0 %v401
        %v931 = vpop.f32.mrf.mxu0
        %v932 = vadd.f32 0.0, %v931
        %v933 = vpop.f32.mrf.mxu0
        %v934 = vadd.f32 0.0, %v933
        %v935 = vpop.f32.mrf.mxu0
        %v936 = vadd.f32 0.0, %v935
        %v937 = vpop.f32.mrf.mxu0
        %v938 = vadd.f32 0.0, %v937
        %939 = vmatprep.mubr.bf16.mxu0 0
        %940 = vmatmul.mubr.bf16.gmra.mxu0 %v404
        %v941 = vpop.f32.mrf.mxu0
        %v942 = vadd.f32 0.0, %v941
        %v943 = vpop.f32.mrf.mxu0
        %v944 = vadd.f32 0.0, %v943
        %v945 = vpop.f32.mrf.mxu0
        %v946 = vadd.f32 0.0, %v945
        %v947 = vpop.f32.mrf.mxu0
        %v948 = vadd.f32 0.0, %v947
        %949 = vmatprep.mubr.bf16.mxu0 0
        %950 = vmatmul.mubr.bf16.gmra.mxu0 %v407
        %v951 = vpop.f32.mrf.mxu0
        %v952 = vadd.f32 0.0, %v951
        %v953 = vpop.f32.mrf.mxu0
        %v954 = vadd.f32 0.0, %v953
        %v955 = vpop.f32.mrf.mxu0
        %v956 = vadd.f32 0.0, %v955
        %v957 = vpop.f32.mrf.mxu0
        %v958 = vadd.f32 0.0, %v957
        %959 = vmatprep.mubr.bf16.mxu0 0
        %960 = vmatmul.mubr.bf16.gmra.mxu0 %v410
        %v961 = vpop.f32.mrf.mxu0
        %v962 = vadd.f32 0.0, %v961
        %v963 = vpop.f32.mrf.mxu0
        %v964 = vadd.f32 0.0, %v963
        %v965 = vpop.f32.mrf.mxu0
        %v966 = vadd.f32 0.0, %v965
        %v967 = vpop.f32.mrf.mxu0
        %v968 = vadd.f32 0.0, %v967
        %969 = vmatprep.mubr.bf16.mxu0 0
        %970 = vmatmul.mubr.bf16.gmra.mxu0 %v413
        %v971 = vpop.f32.mrf.mxu0
        %v972 = vadd.f32 0.0, %v971
        %v973 = vpop.f32.mrf.mxu0
        %v974 = vadd.f32 0.0, %v973
        %v975 = vpop.f32.mrf.mxu0
        %v976 = vadd.f32 0.0, %v975
        %v977 = vpop.f32.mrf.mxu0
        %v978 = vadd.f32 0.0, %v977
        %979 = vdwg.mxu0
        %980 = vmatprep.subr.bf16.mxu0 0
        %981 = vmatpush1.bf16.msra.mxu0 0
        %982 = vmatprep.subr.bf16.mxu0 0
        %983 = vmatpush1.bf16.msra.mxu0 0
        %984 = vmatprep.subr.bf16.mxu0 0
        %985 = vmatpush1.bf16.msra.mxu0 0
        %986 = vmatprep.subr.bf16.mxu0 0
        %987 = vmatpush1.bf16.msra.mxu0 0
        %988 = vmatprep.subr.bf16.mxu0 0
        %989 = vmatpush1.bf16.msra.mxu0 0
        %990 = vmatprep.subr.bf16.mxu0 0
        %991 = vmatpush1.bf16.msra.mxu0 0
        %992 = vmatprep.subr.bf16.mxu0 0
        %993 = vmatpush1.bf16.msra.mxu0 0
        %994 = vmatprep.subr.bf16.mxu0 %v369
        %995 = vmatpush1.bf16.msra.mxu0 %v368
        %996 = vmatprep.subr.bf16.mxu0 0
        %997 = vmatpush2.bf16.msra.mxu0 0
        %998 = vmatprep.subr.bf16.mxu0 0
        %999 = vmatpush2.bf16.msra.mxu0 0
        %1000 = vmatprep.subr.bf16.mxu0 0
        %1001 = vmatpush2.bf16.msra.mxu0 0
        %1002 = vmatprep.subr.bf16.mxu0 0
        %1003 = vmatpush2.bf16.msra.mxu0 0
        %1004 = vmatprep.subr.bf16.mxu0 0
        %1005 = vmatpush2.bf16.msra.mxu0 0
        %1006 = vmatprep.subr.bf16.mxu0 0
        %1007 = vmatpush2.bf16.msra.mxu0 0
        %1008 = vmatprep.subr.bf16.mxu0 0
        %1009 = vmatpush2.bf16.msra.mxu0 0
        %1010 = vmatprep.subr.bf16.mxu0 0
        %1011 = vmatpush2.bf16.msra.mxu0 0
        %1012 = vmatprep.mubr.bf16.mxu0 0
        %1013 = vmatmul.mubr.bf16.gmra.mxu0 %v392
        %v1014 = vpop.f32.mrf.mxu0
        %v1015 = vadd.f32 0.0, %v1014
        %v1016 = vpop.f32.mrf.mxu0
        %v1017 = vadd.f32 0.0, %v1016
        %v1018 = vpop.f32.mrf.mxu0
        %v1019 = vadd.f32 0.0, %v1018
        %v1020 = vpop.f32.mrf.mxu0
        %v1021 = vadd.f32 0.0, %v1020
        %1022 = vmatprep.mubr.bf16.mxu0 0
        %1023 = vmatmul.mubr.bf16.gmra.mxu0 %v395
        %v1024 = vpop.f32.mrf.mxu0
        %v1025 = vadd.f32 0.0, %v1024
        %v1026 = vpop.f32.mrf.mxu0
        %v1027 = vadd.f32 0.0, %v1026
        %v1028 = vpop.f32.mrf.mxu0
        %v1029 = vadd.f32 0.0, %v1028
        %v1030 = vpop.f32.mrf.mxu0
        %v1031 = vadd.f32 0.0, %v1030
        %1032 = vmatprep.mubr.bf16.mxu0 0
        %1033 = vmatmul.mubr.bf16.gmra.mxu0 %v398
        %v1034 = vpop.f32.mrf.mxu0
        %v1035 = vadd.f32 0.0, %v1034
        %v1036 = vpop.f32.mrf.mxu0
        %v1037 = vadd.f32 0.0, %v1036
        %v1038 = vpop.f32.mrf.mxu0
        %v1039 = vadd.f32 0.0, %v1038
        %v1040 = vpop.f32.mrf.mxu0
        %v1041 = vadd.f32 0.0, %v1040
        %1042 = vmatprep.mubr.bf16.mxu0 0
        %1043 = vmatmul.mubr.bf16.gmra.mxu0 %v401
        %v1044 = vpop.f32.mrf.mxu0
        %v1045 = vadd.f32 0.0, %v1044
        %v1046 = vpop.f32.mrf.mxu0
        %v1047 = vadd.f32 0.0, %v1046
        %v1048 = vpop.f32.mrf.mxu0
        %v1049 = vadd.f32 0.0, %v1048
        %v1050 = vpop.f32.mrf.mxu0
        %v1051 = vadd.f32 0.0, %v1050
        %1052 = vmatprep.mubr.bf16.mxu0 0
        %1053 = vmatmul.mubr.bf16.gmra.mxu0 %v404
        %v1054 = vpop.f32.mrf.mxu0
        %v1055 = vadd.f32 0.0, %v1054
        %v1056 = vpop.f32.mrf.mxu0
        %v1057 = vadd.f32 0.0, %v1056
        %v1058 = vpop.f32.mrf.mxu0
        %v1059 = vadd.f32 0.0, %v1058
        %v1060 = vpop.f32.mrf.mxu0
        %v1061 = vadd.f32 0.0, %v1060
        %1062 = vmatprep.mubr.bf16.mxu0 0
        %1063 = vmatmul.mubr.bf16.gmra.mxu0 %v407
        %v1064 = vpop.f32.mrf.mxu0
        %v1065 = vadd.f32 0.0, %v1064
        %v1066 = vpop.f32.mrf.mxu0
        %v1067 = vadd.f32 0.0, %v1066
        %v1068 = vpop.f32.mrf.mxu0
        %v1069 = vadd.f32 0.0, %v1068
        %v1070 = vpop.f32.mrf.mxu0
        %v1071 = vadd.f32 0.0, %v1070
        %1072 = vmatprep.mubr.bf16.mxu0 0
        %1073 = vmatmul.mubr.bf16.gmra.mxu0 %v410
        %v1074 = vpop.f32.mrf.mxu0
        %v1075 = vadd.f32 0.0, %v1074
        %v1076 = vpop.f32.mrf.mxu0
        %v1077 = vadd.f32 0.0, %v1076
        %v1078 = vpop.f32.mrf.mxu0
        %v1079 = vadd.f32 0.0, %v1078
        %v1080 = vpop.f32.mrf.mxu0
        %v1081 = vadd.f32 0.0, %v1080
        %1082 = vmatprep.mubr.bf16.mxu0 0
        %1083 = vmatmul.mubr.bf16.gmra.mxu0 %v413
        %v1084 = vpop.f32.mrf.mxu0
        %v1085 = vadd.f32 0.0, %v1084
        %v1086 = vpop.f32.mrf.mxu0
        %v1087 = vadd.f32 0.0, %v1086
        %v1088 = vpop.f32.mrf.mxu0
        %v1089 = vadd.f32 0.0, %v1088
        %v1090 = vpop.f32.mrf.mxu0
        %v1091 = vadd.f32 0.0, %v1090
        %1092 = vdwg.mxu0
        %1093 = vmatprep.subr.bf16.mxu0 0
        %1094 = vmatpush1.bf16.msra.mxu0 0
        %1095 = vmatprep.subr.bf16.mxu0 0
        %1096 = vmatpush1.bf16.msra.mxu0 0
        %1097 = vmatprep.subr.bf16.mxu0 0
        %1098 = vmatpush1.bf16.msra.mxu0 0
        %1099 = vmatprep.subr.bf16.mxu0 0
        %1100 = vmatpush1.bf16.msra.mxu0 0
        %1101 = vmatprep.subr.bf16.mxu0 0
        %1102 = vmatpush1.bf16.msra.mxu0 0
        %1103 = vmatprep.subr.bf16.mxu0 0
        %1104 = vmatpush1.bf16.msra.mxu0 0
        %1105 = vmatprep.subr.bf16.mxu0 0
        %1106 = vmatpush1.bf16.msra.mxu0 0
        %1107 = vmatprep.subr.bf16.mxu0 %v371
        %1108 = vmatpush1.bf16.msra.mxu0 %v370
        %1109 = vmatprep.subr.bf16.mxu0 0
        %1110 = vmatpush2.bf16.msra.mxu0 0
        %1111 = vmatprep.subr.bf16.mxu0 0
        %1112 = vmatpush2.bf16.msra.mxu0 0
        %1113 = vmatprep.subr.bf16.mxu0 0
        %1114 = vmatpush2.bf16.msra.mxu0 0
        %1115 = vmatprep.subr.bf16.mxu0 0
        %1116 = vmatpush2.bf16.msra.mxu0 0
        %1117 = vmatprep.subr.bf16.mxu0 0
        %1118 = vmatpush2.bf16.msra.mxu0 0
        %1119 = vmatprep.subr.bf16.mxu0 0
        %1120 = vmatpush2.bf16.msra.mxu0 0
        %1121 = vmatprep.subr.bf16.mxu0 0
        %1122 = vmatpush2.bf16.msra.mxu0 0
        %1123 = vmatprep.subr.bf16.mxu0 0
        %1124 = vmatpush2.bf16.msra.mxu0 0
        %1125 = vmatprep.mubr.bf16.mxu0 0
        %1126 = vmatmul.mubr.bf16.gmra.mxu0 %v392
        %v1127 = vpop.f32.mrf.mxu0
        %v1128 = vadd.f32 0.0, %v1127
        %v1129 = vpop.f32.mrf.mxu0
        %v1130 = vadd.f32 0.0, %v1129
        %v1131 = vpop.f32.mrf.mxu0
        %v1132 = vadd.f32 0.0, %v1131
        %v1133 = vpop.f32.mrf.mxu0
        %v1134 = vadd.f32 0.0, %v1133
        %1135 = vmatprep.mubr.bf16.mxu0 0
        %1136 = vmatmul.mubr.bf16.gmra.mxu0 %v395
        %v1137 = vpop.f32.mrf.mxu0
        %v1138 = vadd.f32 0.0, %v1137
        %v1139 = vpop.f32.mrf.mxu0
        %v1140 = vadd.f32 0.0, %v1139
        %v1141 = vpop.f32.mrf.mxu0
        %v1142 = vadd.f32 0.0, %v1141
        %v1143 = vpop.f32.mrf.mxu0
        %v1144 = vadd.f32 0.0, %v1143
        %1145 = vmatprep.mubr.bf16.mxu0 0
        %1146 = vmatmul.mubr.bf16.gmra.mxu0 %v398
        %v1147 = vpop.f32.mrf.mxu0
        %v1148 = vadd.f32 0.0, %v1147
        %v1149 = vpop.f32.mrf.mxu0
        %v1150 = vadd.f32 0.0, %v1149
        %v1151 = vpop.f32.mrf.mxu0
        %v1152 = vadd.f32 0.0, %v1151
        %v1153 = vpop.f32.mrf.mxu0
        %v1154 = vadd.f32 0.0, %v1153
        %1155 = vmatprep.mubr.bf16.mxu0 0
        %1156 = vmatmul.mubr.bf16.gmra.mxu0 %v401
        %v1157 = vpop.f32.mrf.mxu0
        %v1158 = vadd.f32 0.0, %v1157
        %v1159 = vpop.f32.mrf.mxu0
        %v1160 = vadd.f32 0.0, %v1159
        %v1161 = vpop.f32.mrf.mxu0
        %v1162 = vadd.f32 0.0, %v1161
        %v1163 = vpop.f32.mrf.mxu0
        %v1164 = vadd.f32 0.0, %v1163
        %1165 = vmatprep.mubr.bf16.mxu0 0
        %1166 = vmatmul.mubr.bf16.gmra.mxu0 %v404
        %v1167 = vpop.f32.mrf.mxu0
        %v1168 = vadd.f32 0.0, %v1167
        %v1169 = vpop.f32.mrf.mxu0
        %v1170 = vadd.f32 0.0, %v1169
        %v1171 = vpop.f32.mrf.mxu0
        %v1172 = vadd.f32 0.0, %v1171
        %v1173 = vpop.f32.mrf.mxu0
        %v1174 = vadd.f32 0.0, %v1173
        %1175 = vmatprep.mubr.bf16.mxu0 0
        %1176 = vmatmul.mubr.bf16.gmra.mxu0 %v407
        %v1177 = vpop.f32.mrf.mxu0
        %v1178 = vadd.f32 0.0, %v1177
        %v1179 = vpop.f32.mrf.mxu0
        %v1180 = vadd.f32 0.0, %v1179
        %v1181 = vpop.f32.mrf.mxu0
        %v1182 = vadd.f32 0.0, %v1181
        %v1183 = vpop.f32.mrf.mxu0
        %v1184 = vadd.f32 0.0, %v1183
        %1185 = vmatprep.mubr.bf16.mxu0 0
        %1186 = vmatmul.mubr.bf16.gmra.mxu0 %v410
        %v1187 = vpop.f32.mrf.mxu0
        %v1188 = vadd.f32 0.0, %v1187
        %v1189 = vpop.f32.mrf.mxu0
        %v1190 = vadd.f32 0.0, %v1189
        %v1191 = vpop.f32.mrf.mxu0
        %v1192 = vadd.f32 0.0, %v1191
        %v1193 = vpop.f32.mrf.mxu0
        %v1194 = vadd.f32 0.0, %v1193
        %1195 = vmatprep.mubr.bf16.mxu0 0
        %1196 = vmatmul.mubr.bf16.gmra.mxu0 %v413
        %v1197 = vpop.f32.mrf.mxu0
        %v1198 = vadd.f32 0.0, %v1197
        %v1199 = vpop.f32.mrf.mxu0
        %v1200 = vadd.f32 0.0, %v1199
        %v1201 = vpop.f32.mrf.mxu0
        %v1202 = vadd.f32 0.0, %v1201
        %v1203 = vpop.f32.mrf.mxu0
        %v1204 = vadd.f32 0.0, %v1203
        %1205 = vdwg.mxu0
        %1206 = vmatprep.subr.bf16.mxu0 0
        %1207 = vmatpush1.bf16.msra.mxu0 0
        %1208 = vmatprep.subr.bf16.mxu0 0
        %1209 = vmatpush1.bf16.msra.mxu0 0
        %1210 = vmatprep.subr.bf16.mxu0 0
        %1211 = vmatpush1.bf16.msra.mxu0 0
        %1212 = vmatprep.subr.bf16.mxu0 0
        %1213 = vmatpush1.bf16.msra.mxu0 0
        %1214 = vmatprep.subr.bf16.mxu0 0
        %1215 = vmatpush1.bf16.msra.mxu0 0
        %1216 = vmatprep.subr.bf16.mxu0 0
        %1217 = vmatpush1.bf16.msra.mxu0 0
        %1218 = vmatprep.subr.bf16.mxu0 0
        %1219 = vmatpush1.bf16.msra.mxu0 0
        %1220 = vmatprep.subr.bf16.mxu0 %v373
        %1221 = vmatpush1.bf16.msra.mxu0 %v372
        %1222 = vmatprep.subr.bf16.mxu0 0
        %1223 = vmatpush2.bf16.msra.mxu0 0
        %1224 = vmatprep.subr.bf16.mxu0 0
        %1225 = vmatpush2.bf16.msra.mxu0 0
        %1226 = vmatprep.subr.bf16.mxu0 0
        %1227 = vmatpush2.bf16.msra.mxu0 0
        %1228 = vmatprep.subr.bf16.mxu0 0
        %1229 = vmatpush2.bf16.msra.mxu0 0
        %1230 = vmatprep.subr.bf16.mxu0 0
        %1231 = vmatpush2.bf16.msra.mxu0 0
        %1232 = vmatprep.subr.bf16.mxu0 0
        %1233 = vmatpush2.bf16.msra.mxu0 0
        %1234 = vmatprep.subr.bf16.mxu0 0
        %1235 = vmatpush2.bf16.msra.mxu0 0
        %1236 = vmatprep.subr.bf16.mxu0 0
        %1237 = vmatpush2.bf16.msra.mxu0 0
        %1238 = vmatprep.mubr.bf16.mxu0 0
        %1239 = vmatmul.mubr.bf16.gmra.mxu0 %v392
        %v1240 = vpop.f32.mrf.mxu0
        %v1241 = vadd.f32 0.0, %v1240
        %v1242 = vpop.f32.mrf.mxu0
        %v1243 = vadd.f32 0.0, %v1242
        %v1244 = vpop.f32.mrf.mxu0
        %v1245 = vadd.f32 0.0, %v1244
        %v1246 = vpop.f32.mrf.mxu0
        %v1247 = vadd.f32 0.0, %v1246
        %1248 = vmatprep.mubr.bf16.mxu0 0
        %1249 = vmatmul.mubr.bf16.gmra.mxu0 %v395
        %v1250 = vpop.f32.mrf.mxu0
        %v1251 = vadd.f32 0.0, %v1250
        %v1252 = vpop.f32.mrf.mxu0
        %v1253 = vadd.f32 0.0, %v1252
        %v1254 = vpop.f32.mrf.mxu0
        %v1255 = vadd.f32 0.0, %v1254
        %v1256 = vpop.f32.mrf.mxu0
        %v1257 = vadd.f32 0.0, %v1256
        %1258 = vmatprep.mubr.bf16.mxu0 0
        %1259 = vmatmul.mubr.bf16.gmra.mxu0 %v398
        %v1260 = vpop.f32.mrf.mxu0
        %v1261 = vadd.f32 0.0, %v1260
        %v1262 = vpop.f32.mrf.mxu0
        %v1263 = vadd.f32 0.0, %v1262
        %v1264 = vpop.f32.mrf.mxu0
        %v1265 = vadd.f32 0.0, %v1264
        %v1266 = vpop.f32.mrf.mxu0
        %v1267 = vadd.f32 0.0, %v1266
        %1268 = vmatprep.mubr.bf16.mxu0 0
        %1269 = vmatmul.mubr.bf16.gmra.mxu0 %v401
        %v1270 = vpop.f32.mrf.mxu0
        %v1271 = vadd.f32 0.0, %v1270
        %v1272 = vpop.f32.mrf.mxu0
        %v1273 = vadd.f32 0.0, %v1272
        %v1274 = vpop.f32.mrf.mxu0
        %v1275 = vadd.f32 0.0, %v1274
        %v1276 = vpop.f32.mrf.mxu0
        %v1277 = vadd.f32 0.0, %v1276
        %1278 = vmatprep.mubr.bf16.mxu0 0
        %1279 = vmatmul.mubr.bf16.gmra.mxu0 %v404
        %v1280 = vpop.f32.mrf.mxu0
        %v1281 = vadd.f32 0.0, %v1280
        %v1282 = vpop.f32.mrf.mxu0
        %v1283 = vadd.f32 0.0, %v1282
        %v1284 = vpop.f32.mrf.mxu0
        %v1285 = vadd.f32 0.0, %v1284
        %v1286 = vpop.f32.mrf.mxu0
        %v1287 = vadd.f32 0.0, %v1286
        %1288 = vmatprep.mubr.bf16.mxu0 0
        %1289 = vmatmul.mubr.bf16.gmra.mxu0 %v407
        %v1290 = vpop.f32.mrf.mxu0
        %v1291 = vadd.f32 0.0, %v1290
        %v1292 = vpop.f32.mrf.mxu0
        %v1293 = vadd.f32 0.0, %v1292
        %v1294 = vpop.f32.mrf.mxu0
        %v1295 = vadd.f32 0.0, %v1294
        %v1296 = vpop.f32.mrf.mxu0
        %v1297 = vadd.f32 0.0, %v1296
        %1298 = vmatprep.mubr.bf16.mxu0 0
        %1299 = vmatmul.mubr.bf16.gmra.mxu0 %v410
        %v1300 = vpop.f32.mrf.mxu0
        %v1301 = vadd.f32 0.0, %v1300
        %v1302 = vpop.f32.mrf.mxu0
        %v1303 = vadd.f32 0.0, %v1302
        %v1304 = vpop.f32.mrf.mxu0
        %v1305 = vadd.f32 0.0, %v1304
        %v1306 = vpop.f32.mrf.mxu0
        %v1307 = vadd.f32 0.0, %v1306
        %1308 = vmatprep.mubr.bf16.mxu0 0
        %1309 = vmatmul.mubr.bf16.gmra.mxu0 %v413
        %v1310 = vpop.f32.mrf.mxu0
        %v1311 = vadd.f32 0.0, %v1310
        %v1312 = vpop.f32.mrf.mxu0
        %v1313 = vadd.f32 0.0, %v1312
        %v1314 = vpop.f32.mrf.mxu0
        %v1315 = vadd.f32 0.0, %v1314
        %v1316 = vpop.f32.mrf.mxu0
        %v1317 = vadd.f32 0.0, %v1316
        %1318 = vdwg.mxu0
        %v1319 = vmul.f32 %v450, 0.5
        %v1320 = vmul.f32 %v452, 0.5
        %v1321 = vmul.f32 %v563, 0.5
        %v1322 = vmul.f32 %v565, 0.5
        %v1323 = vmul.f32 %v676, 0.5
        %v1324 = vmul.f32 %v678, 0.5
        %v1325 = vmul.f32 %v789, 0.5
        %v1326 = vmul.f32 %v791, 0.5
        %v1327 = vmul.f32 %v902, 0.5
        %v1328 = vmul.f32 %v904, 0.5
        %v1329 = vmul.f32 %v1015, 0.5
        %v1330 = vmul.f32 %v1017, 0.5
        %v1331 = vmul.f32 %v1128, 0.5
        %v1332 = vmul.f32 %v1130, 0.5
        %v1333 = vmul.f32 %v1241, 0.5
        %v1334 = vmul.f32 %v1243, 0.5
        %v1335 = vmul.f32 %v454, 0.5
        %v1336 = vmul.f32 %v456, 0.5
        %v1337 = vmul.f32 %v567, 0.5
        %v1338 = vmul.f32 %v569, 0.5
        %v1339 = vmul.f32 %v680, 0.5
        %v1340 = vmul.f32 %v682, 0.5
        %v1341 = vmul.f32 %v793, 0.5
        %v1342 = vmul.f32 %v795, 0.5
        %v1343 = vmul.f32 %v906, 0.5
        %v1344 = vmul.f32 %v908, 0.5
        %v1345 = vmul.f32 %v1019, 0.5
        %v1346 = vmul.f32 %v1021, 0.5
        %v1347 = vmul.f32 %v1132, 0.5
        %v1348 = vmul.f32 %v1134, 0.5
        %v1349 = vmul.f32 %v1245, 0.5
        %v1350 = vmul.f32 %v1247, 0.5
        %v1351 = vmul.f32 %v460, 0.5
        %v1352 = vmul.f32 %v462, 0.5
        %v1353 = vmul.f32 %v573, 0.5
        %v1354 = vmul.f32 %v575, 0.5
        %v1355 = vmul.f32 %v686, 0.5
        %v1356 = vmul.f32 %v688, 0.5
        %v1357 = vmul.f32 %v799, 0.5
        %v1358 = vmul.f32 %v801, 0.5
        %v1359 = vmul.f32 %v912, 0.5
        %v1360 = vmul.f32 %v914, 0.5
        %v1361 = vmul.f32 %v1025, 0.5
        %v1362 = vmul.f32 %v1027, 0.5
        %v1363 = vmul.f32 %v1138, 0.5
        %v1364 = vmul.f32 %v1140, 0.5
        %v1365 = vmul.f32 %v1251, 0.5
        %v1366 = vmul.f32 %v1253, 0.5
        %v1367 = vmul.f32 %v464, 0.5
        %v1368 = vmul.f32 %v466, 0.5
        %v1369 = vmul.f32 %v577, 0.5
        %v1370 = vmul.f32 %v579, 0.5
        %v1371 = vmul.f32 %v690, 0.5
        %v1372 = vmul.f32 %v692, 0.5
        %v1373 = vmul.f32 %v803, 0.5
        %v1374 = vmul.f32 %v805, 0.5
        %v1375 = vmul.f32 %v916, 0.5
        %v1376 = vmul.f32 %v918, 0.5
        %v1377 = vmul.f32 %v1029, 0.5
        %v1378 = vmul.f32 %v1031, 0.5
        %v1379 = vmul.f32 %v1142, 0.5
        %v1380 = vmul.f32 %v1144, 0.5
        %v1381 = vmul.f32 %v1255, 0.5
        %v1382 = vmul.f32 %v1257, 0.5
        %v1383 = vmul.f32 %v470, 0.5
        %v1384 = vmul.f32 %v472, 0.5
        %v1385 = vmul.f32 %v583, 0.5
        %v1386 = vmul.f32 %v585, 0.5
        %v1387 = vmul.f32 %v696, 0.5
        %v1388 = vmul.f32 %v698, 0.5
        %v1389 = vmul.f32 %v809, 0.5
        %v1390 = vmul.f32 %v811, 0.5
        %v1391 = vmul.f32 %v922, 0.5
        %v1392 = vmul.f32 %v924, 0.5
        %v1393 = vmul.f32 %v1035, 0.5
        %v1394 = vmul.f32 %v1037, 0.5
        %v1395 = vmul.f32 %v1148, 0.5
        %v1396 = vmul.f32 %v1150, 0.5
        %v1397 = vmul.f32 %v1261, 0.5
        %v1398 = vmul.f32 %v1263, 0.5
        %v1399 = vmul.f32 %v474, 0.5
        %v1400 = vmul.f32 %v476, 0.5
        %v1401 = vmul.f32 %v587, 0.5
        %v1402 = vmul.f32 %v589, 0.5
        %v1403 = vmul.f32 %v700, 0.5
        %v1404 = vmul.f32 %v702, 0.5
        %v1405 = vmul.f32 %v813, 0.5
        %v1406 = vmul.f32 %v815, 0.5
        %v1407 = vmul.f32 %v926, 0.5
        %v1408 = vmul.f32 %v928, 0.5
        %v1409 = vmul.f32 %v1039, 0.5
        %v1410 = vmul.f32 %v1041, 0.5
        %v1411 = vmul.f32 %v1152, 0.5
        %v1412 = vmul.f32 %v1154, 0.5
        %v1413 = vmul.f32 %v1265, 0.5
        %v1414 = vmul.f32 %v1267, 0.5
        %v1415 = vmul.f32 %v480, 0.5
        %v1416 = vmul.f32 %v482, 0.5
        %v1417 = vmul.f32 %v593, 0.5
        %v1418 = vmul.f32 %v595, 0.5
        %v1419 = vmul.f32 %v706, 0.5
        %v1420 = vmul.f32 %v708, 0.5
        %v1421 = vmul.f32 %v819, 0.5
        %v1422 = vmul.f32 %v821, 0.5
        %v1423 = vmul.f32 %v932, 0.5
        %v1424 = vmul.f32 %v934, 0.5
        %v1425 = vmul.f32 %v1045, 0.5
        %v1426 = vmul.f32 %v1047, 0.5
        %v1427 = vmul.f32 %v1158, 0.5
        %v1428 = vmul.f32 %v1160, 0.5
        %v1429 = vmul.f32 %v1271, 0.5
        %v1430 = vmul.f32 %v1273, 0.5
        %v1431 = vmul.f32 %v484, 0.5
        %v1432 = vmul.f32 %v486, 0.5
        %v1433 = vmul.f32 %v597, 0.5
        %v1434 = vmul.f32 %v599, 0.5
        %v1435 = vmul.f32 %v710, 0.5
        %v1436 = vmul.f32 %v712, 0.5
        %v1437 = vmul.f32 %v823, 0.5
        %v1438 = vmul.f32 %v825, 0.5
        %v1439 = vmul.f32 %v936, 0.5
        %v1440 = vmul.f32 %v938, 0.5
        %v1441 = vmul.f32 %v1049, 0.5
        %v1442 = vmul.f32 %v1051, 0.5
        %v1443 = vmul.f32 %v1162, 0.5
        %v1444 = vmul.f32 %v1164, 0.5
        %v1445 = vmul.f32 %v1275, 0.5
        %v1446 = vmul.f32 %v1277, 0.5
        %v1447 = vmul.f32 %v490, 0.5
        %v1448 = vmul.f32 %v492, 0.5
        %v1449 = vmul.f32 %v603, 0.5
        %v1450 = vmul.f32 %v605, 0.5
        %v1451 = vmul.f32 %v716, 0.5
        %v1452 = vmul.f32 %v718, 0.5
        %v1453 = vmul.f32 %v829, 0.5
        %v1454 = vmul.f32 %v831, 0.5
        %v1455 = vmul.f32 %v942, 0.5
        %v1456 = vmul.f32 %v944, 0.5
        %v1457 = vmul.f32 %v1055, 0.5
        %v1458 = vmul.f32 %v1057, 0.5
        %v1459 = vmul.f32 %v1168, 0.5
        %v1460 = vmul.f32 %v1170, 0.5
        %v1461 = vmul.f32 %v1281, 0.5
        %v1462 = vmul.f32 %v1283, 0.5
        %v1463 = vmul.f32 %v494, 0.5
        %v1464 = vmul.f32 %v496, 0.5
        %v1465 = vmul.f32 %v607, 0.5
        %v1466 = vmul.f32 %v609, 0.5
        %v1467 = vmul.f32 %v720, 0.5
        %v1468 = vmul.f32 %v722, 0.5
        %v1469 = vmul.f32 %v833, 0.5
        %v1470 = vmul.f32 %v835, 0.5
        %v1471 = vmul.f32 %v946, 0.5
        %v1472 = vmul.f32 %v948, 0.5
        %v1473 = vmul.f32 %v1059, 0.5
        %v1474 = vmul.f32 %v1061, 0.5
        %v1475 = vmul.f32 %v1172, 0.5
        %v1476 = vmul.f32 %v1174, 0.5
        %v1477 = vmul.f32 %v1285, 0.5
        %v1478 = vmul.f32 %v1287, 0.5
        %v1479 = vmul.f32 %v500, 0.5
        %v1480 = vmul.f32 %v502, 0.5
        %v1481 = vmul.f32 %v613, 0.5
        %v1482 = vmul.f32 %v615, 0.5
        %v1483 = vmul.f32 %v726, 0.5
        %v1484 = vmul.f32 %v728, 0.5
        %v1485 = vmul.f32 %v839, 0.5
        %v1486 = vmul.f32 %v841, 0.5
        %v1487 = vmul.f32 %v952, 0.5
        %v1488 = vmul.f32 %v954, 0.5
        %v1489 = vmul.f32 %v1065, 0.5
        %v1490 = vmul.f32 %v1067, 0.5
        %v1491 = vmul.f32 %v1178, 0.5
        %v1492 = vmul.f32 %v1180, 0.5
        %v1493 = vmul.f32 %v1291, 0.5
        %v1494 = vmul.f32 %v1293, 0.5
        %v1495 = vmul.f32 %v504, 0.5
        %v1496 = vmul.f32 %v506, 0.5
        %v1497 = vmul.f32 %v617, 0.5
        %v1498 = vmul.f32 %v619, 0.5
        %v1499 = vmul.f32 %v730, 0.5
        %v1500 = vmul.f32 %v732, 0.5
        %v1501 = vmul.f32 %v843, 0.5
        %v1502 = vmul.f32 %v845, 0.5
        %v1503 = vmul.f32 %v956, 0.5
        %v1504 = vmul.f32 %v958, 0.5
        %v1505 = vmul.f32 %v1069, 0.5
        %v1506 = vmul.f32 %v1071, 0.5
        %v1507 = vmul.f32 %v1182, 0.5
        %v1508 = vmul.f32 %v1184, 0.5
        %v1509 = vmul.f32 %v1295, 0.5
        %v1510 = vmul.f32 %v1297, 0.5
        %v1511 = vmul.f32 %v510, 0.5
        %v1512 = vmul.f32 %v512, 0.5
        %v1513 = vmul.f32 %v623, 0.5
        %v1514 = vmul.f32 %v625, 0.5
        %v1515 = vmul.f32 %v736, 0.5
        %v1516 = vmul.f32 %v738, 0.5
        %v1517 = vmul.f32 %v849, 0.5
        %v1518 = vmul.f32 %v851, 0.5
        %v1519 = vmul.f32 %v962, 0.5
        %v1520 = vmul.f32 %v964, 0.5
        %v1521 = vmul.f32 %v1075, 0.5
        %v1522 = vmul.f32 %v1077, 0.5
        %v1523 = vmul.f32 %v1188, 0.5
        %v1524 = vmul.f32 %v1190, 0.5
        %v1525 = vmul.f32 %v1301, 0.5
        %v1526 = vmul.f32 %v1303, 0.5
        %v1527 = vmul.f32 %v514, 0.5
        %v1528 = vmul.f32 %v516, 0.5
        %v1529 = vmul.f32 %v627, 0.5
        %v1530 = vmul.f32 %v629, 0.5
        %v1531 = vmul.f32 %v740, 0.5
        %v1532 = vmul.f32 %v742, 0.5
        %v1533 = vmul.f32 %v853, 0.5
        %v1534 = vmul.f32 %v855, 0.5
        %v1535 = vmul.f32 %v966, 0.5
        %v1536 = vmul.f32 %v968, 0.5
        %v1537 = vmul.f32 %v1079, 0.5
        %v1538 = vmul.f32 %v1081, 0.5
        %v1539 = vmul.f32 %v1192, 0.5
        %v1540 = vmul.f32 %v1194, 0.5
        %v1541 = vmul.f32 %v1305, 0.5
        %v1542 = vmul.f32 %v1307, 0.5
        %v1543 = vmul.f32 %v520, 0.5
        %v1544 = vmul.f32 %v522, 0.5
        %v1545 = vmul.f32 %v633, 0.5
        %v1546 = vmul.f32 %v635, 0.5
        %v1547 = vmul.f32 %v746, 0.5
        %v1548 = vmul.f32 %v748, 0.5
        %v1549 = vmul.f32 %v859, 0.5
        %v1550 = vmul.f32 %v861, 0.5
        %v1551 = vmul.f32 %v972, 0.5
        %v1552 = vmul.f32 %v974, 0.5
        %v1553 = vmul.f32 %v1085, 0.5
        %v1554 = vmul.f32 %v1087, 0.5
        %v1555 = vmul.f32 %v1198, 0.5
        %v1556 = vmul.f32 %v1200, 0.5
        %v1557 = vmul.f32 %v1311, 0.5
        %v1558 = vmul.f32 %v1313, 0.5
        %v1559 = vmul.f32 %v524, 0.5
        %v1560 = vmul.f32 %v526, 0.5
        %v1561 = vmul.f32 %v637, 0.5
        %v1562 = vmul.f32 %v639, 0.5
        %v1563 = vmul.f32 %v750, 0.5
        %v1564 = vmul.f32 %v752, 0.5
        %v1565 = vmul.f32 %v863, 0.5
        %v1566 = vmul.f32 %v865, 0.5
        %v1567 = vmul.f32 %v976, 0.5
        %v1568 = vmul.f32 %v978, 0.5
        %v1569 = vmul.f32 %v1089, 0.5
        %v1570 = vmul.f32 %v1091, 0.5
        %v1571 = vmul.f32 %v1202, 0.5
        %v1572 = vmul.f32 %v1204, 0.5
        %v1573 = vmul.f32 %v1315, 0.5
        %v1574 = vmul.f32 %v1317, 0.5
        %v1575 = vtanh.pop %v1319
        %v1576 = vtanh.pop %v1320
        %v1577 = vtanh.pop %v1321
        %v1578 = vtanh.pop %v1322
        %v1579 = vtanh.pop %v1323
        %v1580 = vtanh.pop %v1324
        %v1581 = vtanh.pop %v1325
        %v1582 = vtanh.pop %v1326
        %v1583 = vtanh.pop %v1327
        %v1584 = vtanh.pop %v1328
        %v1585 = vtanh.pop %v1329
        %v1586 = vtanh.pop %v1330
        %v1587 = vtanh.pop %v1331
        %v1588 = vtanh.pop %v1332
        %v1589 = vtanh.pop %v1333
        %v1590 = vtanh.pop %v1334
        %v1591 = vtanh.pop %v1335
        %v1592 = vtanh.pop %v1336
        %v1593 = vtanh.pop %v1337
        %v1594 = vtanh.pop %v1338
        %v1595 = vtanh.pop %v1339
        %v1596 = vtanh.pop %v1340
        %v1597 = vtanh.pop %v1341
        %v1598 = vtanh.pop %v1342
        %v1599 = vtanh.pop %v1343
        %v1600 = vtanh.pop %v1344
        %v1601 = vtanh.pop %v1345
        %v1602 = vtanh.pop %v1346
        %v1603 = vtanh.pop %v1347
        %v1604 = vtanh.pop %v1348
        %v1605 = vtanh.pop %v1349
        %v1606 = vtanh.pop %v1350
        %v1607 = vtanh.pop %v1351
        %v1608 = vtanh.pop %v1352
        %v1609 = vtanh.pop %v1353
        %v1610 = vtanh.pop %v1354
        %v1611 = vtanh.pop %v1355
        %v1612 = vtanh.pop %v1356
        %v1613 = vtanh.pop %v1357
        %v1614 = vtanh.pop %v1358
        %v1615 = vtanh.pop %v1359
        %v1616 = vtanh.pop %v1360
        %v1617 = vtanh.pop %v1361
        %v1618 = vtanh.pop %v1362
        %v1619 = vtanh.pop %v1363
        %v1620 = vtanh.pop %v1364
        %v1621 = vtanh.pop %v1365
        %v1622 = vtanh.pop %v1366
        %v1623 = vtanh.pop %v1367
        %v1624 = vtanh.pop %v1368
        %v1625 = vtanh.pop %v1369
        %v1626 = vtanh.pop %v1370
        %v1627 = vtanh.pop %v1371
        %v1628 = vtanh.pop %v1372
        %v1629 = vtanh.pop %v1373
        %v1630 = vtanh.pop %v1374
        %v1631 = vtanh.pop %v1375
        %v1632 = vtanh.pop %v1376
        %v1633 = vtanh.pop %v1377
        %v1634 = vtanh.pop %v1378
        %v1635 = vtanh.pop %v1379
        %v1636 = vtanh.pop %v1380
        %v1637 = vtanh.pop %v1381
        %v1638 = vtanh.pop %v1382
        %v1639 = vtanh.pop %v1383
        %v1640 = vtanh.pop %v1384
        %v1641 = vtanh.pop %v1385
        %v1642 = vtanh.pop %v1386
        %v1643 = vtanh.pop %v1387
        %v1644 = vtanh.pop %v1388
        %v1645 = vtanh.pop %v1389
        %v1646 = vtanh.pop %v1390
        %v1647 = vtanh.pop %v1391
        %v1648 = vtanh.pop %v1392
        %v1649 = vtanh.pop %v1393
        %v1650 = vtanh.pop %v1394
        %v1651 = vtanh.pop %v1395
        %v1652 = vtanh.pop %v1396
        %v1653 = vtanh.pop %v1397
        %v1654 = vtanh.pop %v1398
        %v1655 = vtanh.pop %v1399
        %v1656 = vtanh.pop %v1400
        %v1657 = vtanh.pop %v1401
        %v1658 = vtanh.pop %v1402
        %v1659 = vtanh.pop %v1403
        %v1660 = vtanh.pop %v1404
        %v1661 = vtanh.pop %v1405
        %v1662 = vtanh.pop %v1406
        %v1663 = vtanh.pop %v1407
        %v1664 = vtanh.pop %v1408
        %v1665 = vtanh.pop %v1409
        %v1666 = vtanh.pop %v1410
        %v1667 = vtanh.pop %v1411
        %v1668 = vtanh.pop %v1412
        %v1669 = vtanh.pop %v1413
        %v1670 = vtanh.pop %v1414
        %v1671 = vtanh.pop %v1415
        %v1672 = vtanh.pop %v1416
        %v1673 = vtanh.pop %v1417
        %v1674 = vtanh.pop %v1418
        %v1675 = vtanh.pop %v1419
        %v1676 = vtanh.pop %v1420
        %v1677 = vtanh.pop %v1421
        %v1678 = vtanh.pop %v1422
        %v1679 = vtanh.pop %v1423
        %v1680 = vtanh.pop %v1424
        %v1681 = vtanh.pop %v1425
        %v1682 = vtanh.pop %v1426
        %v1683 = vtanh.pop %v1427
        %v1684 = vtanh.pop %v1428
        %v1685 = vtanh.pop %v1429
        %v1686 = vtanh.pop %v1430
        %v1687 = vtanh.pop %v1431
        %v1688 = vtanh.pop %v1432
        %v1689 = vtanh.pop %v1433
        %v1690 = vtanh.pop %v1434
        %v1691 = vtanh.pop %v1435
        %v1692 = vtanh.pop %v1436
        %v1693 = vtanh.pop %v1437
        %v1694 = vtanh.pop %v1438
        %v1695 = vtanh.pop %v1439
        %v1696 = vtanh.pop %v1440
        %v1697 = vtanh.pop %v1441
        %v1698 = vtanh.pop %v1442
        %v1699 = vtanh.pop %v1443
        %v1700 = vtanh.pop %v1444
        %v1701 = vtanh.pop %v1445
        %v1702 = vtanh.pop %v1446
        %v1703 = vtanh.pop %v1447
        %v1704 = vtanh.pop %v1448
        %v1705 = vtanh.pop %v1449
        %v1706 = vtanh.pop %v1450
        %v1707 = vtanh.pop %v1451
        %v1708 = vtanh.pop %v1452
        %v1709 = vtanh.pop %v1453
        %v1710 = vtanh.pop %v1454
        %v1711 = vtanh.pop %v1455
        %v1712 = vtanh.pop %v1456
        %v1713 = vtanh.pop %v1457
        %v1714 = vtanh.pop %v1458
        %v1715 = vtanh.pop %v1459
        %v1716 = vtanh.pop %v1460
        %v1717 = vtanh.pop %v1461
        %v1718 = vtanh.pop %v1462
        %v1719 = vtanh.pop %v1463
        %v1720 = vtanh.pop %v1464
        %v1721 = vtanh.pop %v1465
        %v1722 = vtanh.pop %v1466
        %v1723 = vtanh.pop %v1467
        %v1724 = vtanh.pop %v1468
        %v1725 = vtanh.pop %v1469
        %v1726 = vtanh.pop %v1470
        %v1727 = vtanh.pop %v1471
        %v1728 = vtanh.pop %v1472
        %v1729 = vtanh.pop %v1473
        %v1730 = vtanh.pop %v1474
        %v1731 = vtanh.pop %v1475
        %v1732 = vtanh.pop %v1476
        %v1733 = vtanh.pop %v1477
        %v1734 = vtanh.pop %v1478
        %v1735 = vtanh.pop %v1479
        %v1736 = vtanh.pop %v1480
        %v1737 = vtanh.pop %v1481
        %v1738 = vtanh.pop %v1482
        %v1739 = vtanh.pop %v1483
        %v1740 = vtanh.pop %v1484
        %v1741 = vtanh.pop %v1485
        %v1742 = vtanh.pop %v1486
        %v1743 = vtanh.pop %v1487
        %v1744 = vtanh.pop %v1488
        %v1745 = vtanh.pop %v1489
        %v1746 = vtanh.pop %v1490
        %v1747 = vtanh.pop %v1491
        %v1748 = vtanh.pop %v1492
        %v1749 = vtanh.pop %v1493
        %v1750 = vtanh.pop %v1494
        %v1751 = vtanh.pop %v1495
        %v1752 = vtanh.pop %v1496
        %v1753 = vtanh.pop %v1497
        %v1754 = vtanh.pop %v1498
        %v1755 = vtanh.pop %v1499
        %v1756 = vtanh.pop %v1500
        %v1757 = vtanh.pop %v1501
        %v1758 = vtanh.pop %v1502
        %v1759 = vtanh.pop %v1503
        %v1760 = vtanh.pop %v1504
        %v1761 = vtanh.pop %v1505
        %v1762 = vtanh.pop %v1506
        %v1763 = vtanh.pop %v1507
        %v1764 = vtanh.pop %v1508
        %v1765 = vtanh.pop %v1509
        %v1766 = vtanh.pop %v1510
        %v1767 = vtanh.pop %v1511
        %v1768 = vtanh.pop %v1512
        %v1769 = vtanh.pop %v1513
        %v1770 = vtanh.pop %v1514
        %v1771 = vtanh.pop %v1515
        %v1772 = vtanh.pop %v1516
        %v1773 = vtanh.pop %v1517
        %v1774 = vtanh.pop %v1518
        %v1775 = vtanh.pop %v1519
        %v1776 = vtanh.pop %v1520
        %v1777 = vtanh.pop %v1521
        %v1778 = vtanh.pop %v1522
        %v1779 = vtanh.pop %v1523
        %v1780 = vtanh.pop %v1524
        %v1781 = vtanh.pop %v1525
        %v1782 = vtanh.pop %v1526
        %v1783 = vtanh.pop %v1527
        %v1784 = vtanh.pop %v1528
        %v1785 = vtanh.pop %v1529
        %v1786 = vtanh.pop %v1530
        %v1787 = vtanh.pop %v1531
        %v1788 = vtanh.pop %v1532
        %v1789 = vtanh.pop %v1533
        %v1790 = vtanh.pop %v1534
        %v1791 = vtanh.pop %v1535
        %v1792 = vtanh.pop %v1536
        %v1793 = vtanh.pop %v1537
        %v1794 = vtanh.pop %v1538
        %v1795 = vtanh.pop %v1539
        %v1796 = vtanh.pop %v1540
        %v1797 = vtanh.pop %v1541
        %v1798 = vtanh.pop %v1542
        %v1799 = vtanh.pop %v1543
        %v1800 = vtanh.pop %v1544
        %v1801 = vtanh.pop %v1545
        %v1802 = vtanh.pop %v1546
        %v1803 = vtanh.pop %v1547
        %v1804 = vtanh.pop %v1548
        %v1805 = vtanh.pop %v1549
        %v1806 = vtanh.pop %v1550
        %v1807 = vtanh.pop %v1551
        %v1808 = vtanh.pop %v1552
        %v1809 = vtanh.pop %v1553
        %v1810 = vtanh.pop %v1554
        %v1811 = vtanh.pop %v1555
        %v1812 = vtanh.pop %v1556
        %v1813 = vtanh.pop %v1557
        %v1814 = vtanh.pop %v1558
        %v1815 = vtanh.pop %v1559
        %v1816 = vtanh.pop %v1560
        %v1817 = vtanh.pop %v1561
        %v1818 = vtanh.pop %v1562
        %v1819 = vtanh.pop %v1563
        %v1820 = vtanh.pop %v1564
        %v1821 = vtanh.pop %v1565
        %v1822 = vtanh.pop %v1566
        %v1823 = vtanh.pop %v1567
        %v1824 = vtanh.pop %v1568
        %v1825 = vtanh.pop %v1569
        %v1826 = vtanh.pop %v1570
        %v1827 = vtanh.pop %v1571
        %v1828 = vtanh.pop %v1572
        %v1829 = vtanh.pop %v1573
        %v1830 = vtanh.pop %v1574
        %v1831 = vadd.f32 %v1575, 1.0
        %v1832 = vadd.f32 %v1576, 1.0
        %v1833 = vadd.f32 %v1577, 1.0
        %v1834 = vadd.f32 %v1578, 1.0
        %v1835 = vadd.f32 %v1579, 1.0
        %v1836 = vadd.f32 %v1580, 1.0
        %v1837 = vadd.f32 %v1581, 1.0
        %v1838 = vadd.f32 %v1582, 1.0
        %v1839 = vadd.f32 %v1583, 1.0
        %v1840 = vadd.f32 %v1584, 1.0
        %v1841 = vadd.f32 %v1585, 1.0
        %v1842 = vadd.f32 %v1586, 1.0
        %v1843 = vadd.f32 %v1587, 1.0
        %v1844 = vadd.f32 %v1588, 1.0
        %v1845 = vadd.f32 %v1589, 1.0
        %v1846 = vadd.f32 %v1590, 1.0
        %v1847 = vadd.f32 %v1591, 1.0
        %v1848 = vadd.f32 %v1592, 1.0
        %v1849 = vadd.f32 %v1593, 1.0
        %v1850 = vadd.f32 %v1594, 1.0
        %v1851 = vadd.f32 %v1595, 1.0
        %v1852 = vadd.f32 %v1596, 1.0
        %v1853 = vadd.f32 %v1597, 1.0
        %v1854 = vadd.f32 %v1598, 1.0
        %v1855 = vadd.f32 %v1599, 1.0
        %v1856 = vadd.f32 %v1600, 1.0
        %v1857 = vadd.f32 %v1601, 1.0
        %v1858 = vadd.f32 %v1602, 1.0
        %v1859 = vadd.f32 %v1603, 1.0
        %v1860 = vadd.f32 %v1604, 1.0
        %v1861 = vadd.f32 %v1605, 1.0
        %v1862 = vadd.f32 %v1606, 1.0
        %v1863 = vadd.f32 %v1607, 1.0
        %v1864 = vadd.f32 %v1608, 1.0
        %v1865 = vadd.f32 %v1609, 1.0
        %v1866 = vadd.f32 %v1610, 1.0
        %v1867 = vadd.f32 %v1611, 1.0
        %v1868 = vadd.f32 %v1612, 1.0
        %v1869 = vadd.f32 %v1613, 1.0
        %v1870 = vadd.f32 %v1614, 1.0
        %v1871 = vadd.f32 %v1615, 1.0
        %v1872 = vadd.f32 %v1616, 1.0
        %v1873 = vadd.f32 %v1617, 1.0
        %v1874 = vadd.f32 %v1618, 1.0
        %v1875 = vadd.f32 %v1619, 1.0
        %v1876 = vadd.f32 %v1620, 1.0
        %v1877 = vadd.f32 %v1621, 1.0
        %v1878 = vadd.f32 %v1622, 1.0
        %v1879 = vadd.f32 %v1623, 1.0
        %v1880 = vadd.f32 %v1624, 1.0
        %v1881 = vadd.f32 %v1625, 1.0
        %v1882 = vadd.f32 %v1626, 1.0
        %v1883 = vadd.f32 %v1627, 1.0
        %v1884 = vadd.f32 %v1628, 1.0
        %v1885 = vadd.f32 %v1629, 1.0
        %v1886 = vadd.f32 %v1630, 1.0
        %v1887 = vadd.f32 %v1631, 1.0
        %v1888 = vadd.f32 %v1632, 1.0
        %v1889 = vadd.f32 %v1633, 1.0
        %v1890 = vadd.f32 %v1634, 1.0
        %v1891 = vadd.f32 %v1635, 1.0
        %v1892 = vadd.f32 %v1636, 1.0
        %v1893 = vadd.f32 %v1637, 1.0
        %v1894 = vadd.f32 %v1638, 1.0
        %v1895 = vadd.f32 %v1639, 1.0
        %v1896 = vadd.f32 %v1640, 1.0
        %v1897 = vadd.f32 %v1641, 1.0
        %v1898 = vadd.f32 %v1642, 1.0
        %v1899 = vadd.f32 %v1643, 1.0
        %v1900 = vadd.f32 %v1644, 1.0
        %v1901 = vadd.f32 %v1645, 1.0
        %v1902 = vadd.f32 %v1646, 1.0
        %v1903 = vadd.f32 %v1647, 1.0
        %v1904 = vadd.f32 %v1648, 1.0
        %v1905 = vadd.f32 %v1649, 1.0
        %v1906 = vadd.f32 %v1650, 1.0
        %v1907 = vadd.f32 %v1651, 1.0
        %v1908 = vadd.f32 %v1652, 1.0
        %v1909 = vadd.f32 %v1653, 1.0
        %v1910 = vadd.f32 %v1654, 1.0
        %v1911 = vadd.f32 %v1655, 1.0
        %v1912 = vadd.f32 %v1656, 1.0
        %v1913 = vadd.f32 %v1657, 1.0
        %v1914 = vadd.f32 %v1658, 1.0
        %v1915 = vadd.f32 %v1659, 1.0
        %v1916 = vadd.f32 %v1660, 1.0
        %v1917 = vadd.f32 %v1661, 1.0
        %v1918 = vadd.f32 %v1662, 1.0
        %v1919 = vadd.f32 %v1663, 1.0
        %v1920 = vadd.f32 %v1664, 1.0
        %v1921 = vadd.f32 %v1665, 1.0
        %v1922 = vadd.f32 %v1666, 1.0
        %v1923 = vadd.f32 %v1667, 1.0
        %v1924 = vadd.f32 %v1668, 1.0
        %v1925 = vadd.f32 %v1669, 1.0
        %v1926 = vadd.f32 %v1670, 1.0
        %v1927 = vadd.f32 %v1671, 1.0
        %v1928 = vadd.f32 %v1672, 1.0
        %v1929 = vadd.f32 %v1673, 1.0
        %v1930 = vadd.f32 %v1674, 1.0
        %v1931 = vadd.f32 %v1675, 1.0
        %v1932 = vadd.f32 %v1676, 1.0
        %v1933 = vadd.f32 %v1677, 1.0
        %v1934 = vadd.f32 %v1678, 1.0
        %v1935 = vadd.f32 %v1679, 1.0
        %v1936 = vadd.f32 %v1680, 1.0
        %v1937 = vadd.f32 %v1681, 1.0
        %v1938 = vadd.f32 %v1682, 1.0
        %v1939 = vadd.f32 %v1683, 1.0
        %v1940 = vadd.f32 %v1684, 1.0
        %v1941 = vadd.f32 %v1685, 1.0
        %v1942 = vadd.f32 %v1686, 1.0
        %v1943 = vadd.f32 %v1687, 1.0
        %v1944 = vadd.f32 %v1688, 1.0
        %v1945 = vadd.f32 %v1689, 1.0
        %v1946 = vadd.f32 %v1690, 1.0
        %v1947 = vadd.f32 %v1691, 1.0
        %v1948 = vadd.f32 %v1692, 1.0
        %v1949 = vadd.f32 %v1693, 1.0
        %v1950 = vadd.f32 %v1694, 1.0
        %v1951 = vadd.f32 %v1695, 1.0
        %v1952 = vadd.f32 %v1696, 1.0
        %v1953 = vadd.f32 %v1697, 1.0
        %v1954 = vadd.f32 %v1698, 1.0
        %v1955 = vadd.f32 %v1699, 1.0
        %v1956 = vadd.f32 %v1700, 1.0
        %v1957 = vadd.f32 %v1701, 1.0
        %v1958 = vadd.f32 %v1702, 1.0
        %v1959 = vadd.f32 %v1703, 1.0
        %v1960 = vadd.f32 %v1704, 1.0
        %v1961 = vadd.f32 %v1705, 1.0
        %v1962 = vadd.f32 %v1706, 1.0
        %v1963 = vadd.f32 %v1707, 1.0
        %v1964 = vadd.f32 %v1708, 1.0
        %v1965 = vadd.f32 %v1709, 1.0
        %v1966 = vadd.f32 %v1710, 1.0
        %v1967 = vadd.f32 %v1711, 1.0
        %v1968 = vadd.f32 %v1712, 1.0
        %v1969 = vadd.f32 %v1713, 1.0
        %v1970 = vadd.f32 %v1714, 1.0
        %v1971 = vadd.f32 %v1715, 1.0
        %v1972 = vadd.f32 %v1716, 1.0
        %v1973 = vadd.f32 %v1717, 1.0
        %v1974 = vadd.f32 %v1718, 1.0
        %v1975 = vadd.f32 %v1719, 1.0
        %v1976 = vadd.f32 %v1720, 1.0
        %v1977 = vadd.f32 %v1721, 1.0
        %v1978 = vadd.f32 %v1722, 1.0
        %v1979 = vadd.f32 %v1723, 1.0
        %v1980 = vadd.f32 %v1724, 1.0
        %v1981 = vadd.f32 %v1725, 1.0
        %v1982 = vadd.f32 %v1726, 1.0
        %v1983 = vadd.f32 %v1727, 1.0
        %v1984 = vadd.f32 %v1728, 1.0
        %v1985 = vadd.f32 %v1729, 1.0
        %v1986 = vadd.f32 %v1730, 1.0
        %v1987 = vadd.f32 %v1731, 1.0
        %v1988 = vadd.f32 %v1732, 1.0
        %v1989 = vadd.f32 %v1733, 1.0
        %v1990 = vadd.f32 %v1734, 1.0
        %v1991 = vadd.f32 %v1735, 1.0
        %v1992 = vadd.f32 %v1736, 1.0
        %v1993 = vadd.f32 %v1737, 1.0
        %v1994 = vadd.f32 %v1738, 1.0
        %v1995 = vadd.f32 %v1739, 1.0
        %v1996 = vadd.f32 %v1740, 1.0
        %v1997 = vadd.f32 %v1741, 1.0
        %v1998 = vadd.f32 %v1742, 1.0
        %v1999 = vadd.f32 %v1743, 1.0
        %v2000 = vadd.f32 %v1744, 1.0
        %v2001 = vadd.f32 %v1745, 1.0
        %v2002 = vadd.f32 %v1746, 1.0
        %v2003 = vadd.f32 %v1747, 1.0
        %v2004 = vadd.f32 %v1748, 1.0
        %v2005 = vadd.f32 %v1749, 1.0
        %v2006 = vadd.f32 %v1750, 1.0
        %v2007 = vadd.f32 %v1751, 1.0
        %v2008 = vadd.f32 %v1752, 1.0
        %v2009 = vadd.f32 %v1753, 1.0
        %v2010 = vadd.f32 %v1754, 1.0
        %v2011 = vadd.f32 %v1755, 1.0
        %v2012 = vadd.f32 %v1756, 1.0
        %v2013 = vadd.f32 %v1757, 1.0
        %v2014 = vadd.f32 %v1758, 1.0
        %v2015 = vadd.f32 %v1759, 1.0
        %v2016 = vadd.f32 %v1760, 1.0
        %v2017 = vadd.f32 %v1761, 1.0
        %v2018 = vadd.f32 %v1762, 1.0
        %v2019 = vadd.f32 %v1763, 1.0
        %v2020 = vadd.f32 %v1764, 1.0
        %v2021 = vadd.f32 %v1765, 1.0
        %v2022 = vadd.f32 %v1766, 1.0
        %v2023 = vadd.f32 %v1767, 1.0
        %v2024 = vadd.f32 %v1768, 1.0
        %v2025 = vadd.f32 %v1769, 1.0
        %v2026 = vadd.f32 %v1770, 1.0
        %v2027 = vadd.f32 %v1771, 1.0
        %v2028 = vadd.f32 %v1772, 1.0
        %v2029 = vadd.f32 %v1773, 1.0
        %v2030 = vadd.f32 %v1774, 1.0
        %v2031 = vadd.f32 %v1775, 1.0
        %v2032 = vadd.f32 %v1776, 1.0
        %v2033 = vadd.f32 %v1777, 1.0
        %v2034 = vadd.f32 %v1778, 1.0
        %v2035 = vadd.f32 %v1779, 1.0
        %v2036 = vadd.f32 %v1780, 1.0
        %v2037 = vadd.f32 %v1781, 1.0
        %v2038 = vadd.f32 %v1782, 1.0
        %v2039 = vadd.f32 %v1783, 1.0
        %v2040 = vadd.f32 %v1784, 1.0
        %v2041 = vadd.f32 %v1785, 1.0
        %v2042 = vadd.f32 %v1786, 1.0
        %v2043 = vadd.f32 %v1787, 1.0
        %v2044 = vadd.f32 %v1788, 1.0
        %v2045 = vadd.f32 %v1789, 1.0
        %v2046 = vadd.f32 %v1790, 1.0
        %v2047 = vadd.f32 %v1791, 1.0
        %v2048 = vadd.f32 %v1792, 1.0
        %v2049 = vadd.f32 %v1793, 1.0
        %v2050 = vadd.f32 %v1794, 1.0
        %v2051 = vadd.f32 %v1795, 1.0
        %v2052 = vadd.f32 %v1796, 1.0
        %v2053 = vadd.f32 %v1797, 1.0
        %v2054 = vadd.f32 %v1798, 1.0
        %v2055 = vadd.f32 %v1799, 1.0
        %v2056 = vadd.f32 %v1800, 1.0
        %v2057 = vadd.f32 %v1801, 1.0
        %v2058 = vadd.f32 %v1802, 1.0
        %v2059 = vadd.f32 %v1803, 1.0
        %v2060 = vadd.f32 %v1804, 1.0
        %v2061 = vadd.f32 %v1805, 1.0
        %v2062 = vadd.f32 %v1806, 1.0
        %v2063 = vadd.f32 %v1807, 1.0
        %v2064 = vadd.f32 %v1808, 1.0
        %v2065 = vadd.f32 %v1809, 1.0
        %v2066 = vadd.f32 %v1810, 1.0
        %v2067 = vadd.f32 %v1811, 1.0
        %v2068 = vadd.f32 %v1812, 1.0
        %v2069 = vadd.f32 %v1813, 1.0
        %v2070 = vadd.f32 %v1814, 1.0
        %v2071 = vadd.f32 %v1815, 1.0
        %v2072 = vadd.f32 %v1816, 1.0
        %v2073 = vadd.f32 %v1817, 1.0
        %v2074 = vadd.f32 %v1818, 1.0
        %v2075 = vadd.f32 %v1819, 1.0
        %v2076 = vadd.f32 %v1820, 1.0
        %v2077 = vadd.f32 %v1821, 1.0
        %v2078 = vadd.f32 %v1822, 1.0
        %v2079 = vadd.f32 %v1823, 1.0
        %v2080 = vadd.f32 %v1824, 1.0
        %v2081 = vadd.f32 %v1825, 1.0
        %v2082 = vadd.f32 %v1826, 1.0
        %v2083 = vadd.f32 %v1827, 1.0
        %v2084 = vadd.f32 %v1828, 1.0
        %v2085 = vadd.f32 %v1829, 1.0
        %v2086 = vadd.f32 %v1830, 1.0
        %v2087 = vmul.f32 %v1319, %v1831
        %v2088 = vmul.f32 %v1320, %v1832
        %v2089 = vmul.f32 %v1321, %v1833
        %v2090 = vmul.f32 %v1322, %v1834
        %v2091 = vmul.f32 %v1323, %v1835
        %v2092 = vmul.f32 %v1324, %v1836
        %v2093 = vmul.f32 %v1325, %v1837
        %v2094 = vmul.f32 %v1326, %v1838
        %v2095 = vmul.f32 %v1327, %v1839
        %v2096 = vmul.f32 %v1328, %v1840
        %v2097 = vmul.f32 %v1329, %v1841
        %v2098 = vmul.f32 %v1330, %v1842
        %v2099 = vmul.f32 %v1331, %v1843
        %v2100 = vmul.f32 %v1332, %v1844
        %v2101 = vmul.f32 %v1333, %v1845
        %v2102 = vmul.f32 %v1334, %v1846
        %v2103 = vmul.f32 %v1335, %v1847
        %v2104 = vmul.f32 %v1336, %v1848
        %v2105 = vmul.f32 %v1337, %v1849
        %v2106 = vmul.f32 %v1338, %v1850
        %v2107 = vmul.f32 %v1339, %v1851
        %v2108 = vmul.f32 %v1340, %v1852
        %v2109 = vmul.f32 %v1341, %v1853
        %v2110 = vmul.f32 %v1342, %v1854
        %v2111 = vmul.f32 %v1343, %v1855
        %v2112 = vmul.f32 %v1344, %v1856
        %v2113 = vmul.f32 %v1345, %v1857
        %v2114 = vmul.f32 %v1346, %v1858
        %v2115 = vmul.f32 %v1347, %v1859
        %v2116 = vmul.f32 %v1348, %v1860
        %v2117 = vmul.f32 %v1349, %v1861
        %v2118 = vmul.f32 %v1350, %v1862
        %v2119 = vmul.f32 %v1351, %v1863
        %v2120 = vmul.f32 %v1352, %v1864
        %v2121 = vmul.f32 %v1353, %v1865
        %v2122 = vmul.f32 %v1354, %v1866
        %v2123 = vmul.f32 %v1355, %v1867
        %v2124 = vmul.f32 %v1356, %v1868
        %v2125 = vmul.f32 %v1357, %v1869
        %v2126 = vmul.f32 %v1358, %v1870
        %v2127 = vmul.f32 %v1359, %v1871
        %v2128 = vmul.f32 %v1360, %v1872
        %v2129 = vmul.f32 %v1361, %v1873
        %v2130 = vmul.f32 %v1362, %v1874
        %v2131 = vmul.f32 %v1363, %v1875
        %v2132 = vmul.f32 %v1364, %v1876
        %v2133 = vmul.f32 %v1365, %v1877
        %v2134 = vmul.f32 %v1366, %v1878
        %v2135 = vmul.f32 %v1367, %v1879
        %v2136 = vmul.f32 %v1368, %v1880
        %v2137 = vmul.f32 %v1369, %v1881
        %v2138 = vmul.f32 %v1370, %v1882
        %v2139 = vmul.f32 %v1371, %v1883
        %v2140 = vmul.f32 %v1372, %v1884
        %v2141 = vmul.f32 %v1373, %v1885
        %v2142 = vmul.f32 %v1374, %v1886
        %v2143 = vmul.f32 %v1375, %v1887
        %v2144 = vmul.f32 %v1376, %v1888
        %v2145 = vmul.f32 %v1377, %v1889
        %v2146 = vmul.f32 %v1378, %v1890
        %v2147 = vmul.f32 %v1379, %v1891
        %v2148 = vmul.f32 %v1380, %v1892
        %v2149 = vmul.f32 %v1381, %v1893
        %v2150 = vmul.f32 %v1382, %v1894
        %v2151 = vmul.f32 %v1383, %v1895
        %v2152 = vmul.f32 %v1384, %v1896
        %v2153 = vmul.f32 %v1385, %v1897
        %v2154 = vmul.f32 %v1386, %v1898
        %v2155 = vmul.f32 %v1387, %v1899
        %v2156 = vmul.f32 %v1388, %v1900
        %v2157 = vmul.f32 %v1389, %v1901
        %v2158 = vmul.f32 %v1390, %v1902
        %v2159 = vmul.f32 %v1391, %v1903
        %v2160 = vmul.f32 %v1392, %v1904
        %v2161 = vmul.f32 %v1393, %v1905
        %v2162 = vmul.f32 %v1394, %v1906
        %v2163 = vmul.f32 %v1395, %v1907
        %v2164 = vmul.f32 %v1396, %v1908
        %v2165 = vmul.f32 %v1397, %v1909
        %v2166 = vmul.f32 %v1398, %v1910
        %v2167 = vmul.f32 %v1399, %v1911
        %v2168 = vmul.f32 %v1400, %v1912
        %v2169 = vmul.f32 %v1401, %v1913
        %v2170 = vmul.f32 %v1402, %v1914
        %v2171 = vmul.f32 %v1403, %v1915
        %v2172 = vmul.f32 %v1404, %v1916
        %v2173 = vmul.f32 %v1405, %v1917
        %v2174 = vmul.f32 %v1406, %v1918
        %v2175 = vmul.f32 %v1407, %v1919
        %v2176 = vmul.f32 %v1408, %v1920
        %v2177 = vmul.f32 %v1409, %v1921
        %v2178 = vmul.f32 %v1410, %v1922
        %v2179 = vmul.f32 %v1411, %v1923
        %v2180 = vmul.f32 %v1412, %v1924
        %v2181 = vmul.f32 %v1413, %v1925
        %v2182 = vmul.f32 %v1414, %v1926
        %v2183 = vmul.f32 %v1415, %v1927
        %v2184 = vmul.f32 %v1416, %v1928
        %v2185 = vmul.f32 %v1417, %v1929
        %v2186 = vmul.f32 %v1418, %v1930
        %v2187 = vmul.f32 %v1419, %v1931
        %v2188 = vmul.f32 %v1420, %v1932
        %v2189 = vmul.f32 %v1421, %v1933
        %v2190 = vmul.f32 %v1422, %v1934
        %v2191 = vmul.f32 %v1423, %v1935
        %v2192 = vmul.f32 %v1424, %v1936
        %v2193 = vmul.f32 %v1425, %v1937
        %v2194 = vmul.f32 %v1426, %v1938
        %v2195 = vmul.f32 %v1427, %v1939
        %v2196 = vmul.f32 %v1428, %v1940
        %v2197 = vmul.f32 %v1429, %v1941
        %v2198 = vmul.f32 %v1430, %v1942
        %v2199 = vmul.f32 %v1431, %v1943
        %v2200 = vmul.f32 %v1432, %v1944
        %v2201 = vmul.f32 %v1433, %v1945
        %v2202 = vmul.f32 %v1434, %v1946
        %v2203 = vmul.f32 %v1435, %v1947
        %v2204 = vmul.f32 %v1436, %v1948
        %v2205 = vmul.f32 %v1437, %v1949
        %v2206 = vmul.f32 %v1438, %v1950
        %v2207 = vmul.f32 %v1439, %v1951
        %v2208 = vmul.f32 %v1440, %v1952
        %v2209 = vmul.f32 %v1441, %v1953
        %v2210 = vmul.f32 %v1442, %v1954
        %v2211 = vmul.f32 %v1443, %v1955
        %v2212 = vmul.f32 %v1444, %v1956
        %v2213 = vmul.f32 %v1445, %v1957
        %v2214 = vmul.f32 %v1446, %v1958
        %v2215 = vmul.f32 %v1447, %v1959
        %v2216 = vmul.f32 %v1448, %v1960
        %v2217 = vmul.f32 %v1449, %v1961
        %v2218 = vmul.f32 %v1450, %v1962
        %v2219 = vmul.f32 %v1451, %v1963
        %v2220 = vmul.f32 %v1452, %v1964
        %v2221 = vmul.f32 %v1453, %v1965
        %v2222 = vmul.f32 %v1454, %v1966
        %v2223 = vmul.f32 %v1455, %v1967
        %v2224 = vmul.f32 %v1456, %v1968
        %v2225 = vmul.f32 %v1457, %v1969
        %v2226 = vmul.f32 %v1458, %v1970
        %v2227 = vmul.f32 %v1459, %v1971
        %v2228 = vmul.f32 %v1460, %v1972
        %v2229 = vmul.f32 %v1461, %v1973
        %v2230 = vmul.f32 %v1462, %v1974
        %v2231 = vmul.f32 %v1463, %v1975
        %v2232 = vmul.f32 %v1464, %v1976
        %v2233 = vmul.f32 %v1465, %v1977
        %v2234 = vmul.f32 %v1466, %v1978
        %v2235 = vmul.f32 %v1467, %v1979
        %v2236 = vmul.f32 %v1468, %v1980
        %v2237 = vmul.f32 %v1469, %v1981
        %v2238 = vmul.f32 %v1470, %v1982
        %v2239 = vmul.f32 %v1471, %v1983
        %v2240 = vmul.f32 %v1472, %v1984
        %v2241 = vmul.f32 %v1473, %v1985
        %v2242 = vmul.f32 %v1474, %v1986
        %v2243 = vmul.f32 %v1475, %v1987
        %v2244 = vmul.f32 %v1476, %v1988
        %v2245 = vmul.f32 %v1477, %v1989
        %v2246 = vmul.f32 %v1478, %v1990
        %v2247 = vmul.f32 %v1479, %v1991
        %v2248 = vmul.f32 %v1480, %v1992
        %v2249 = vmul.f32 %v1481, %v1993
        %v2250 = vmul.f32 %v1482, %v1994
        %v2251 = vmul.f32 %v1483, %v1995
        %v2252 = vmul.f32 %v1484, %v1996
        %v2253 = vmul.f32 %v1485, %v1997
        %v2254 = vmul.f32 %v1486, %v1998
        %v2255 = vmul.f32 %v1487, %v1999
        %v2256 = vmul.f32 %v1488, %v2000
        %v2257 = vmul.f32 %v1489, %v2001
        %v2258 = vmul.f32 %v1490, %v2002
        %v2259 = vmul.f32 %v1491, %v2003
        %v2260 = vmul.f32 %v1492, %v2004
        %v2261 = vmul.f32 %v1493, %v2005
        %v2262 = vmul.f32 %v1494, %v2006
        %v2263 = vmul.f32 %v1495, %v2007
        %v2264 = vmul.f32 %v1496, %v2008
        %v2265 = vmul.f32 %v1497, %v2009
        %v2266 = vmul.f32 %v1498, %v2010
        %v2267 = vmul.f32 %v1499, %v2011
        %v2268 = vmul.f32 %v1500, %v2012
        %v2269 = vmul.f32 %v1501, %v2013
        %v2270 = vmul.f32 %v1502, %v2014
        %v2271 = vmul.f32 %v1503, %v2015
        %v2272 = vmul.f32 %v1504, %v2016
        %v2273 = vmul.f32 %v1505, %v2017
        %v2274 = vmul.f32 %v1506, %v2018
        %v2275 = vmul.f32 %v1507, %v2019
        %v2276 = vmul.f32 %v1508, %v2020
        %v2277 = vmul.f32 %v1509, %v2021
        %v2278 = vmul.f32 %v1510, %v2022
        %v2279 = vmul.f32 %v1511, %v2023
        %v2280 = vmul.f32 %v1512, %v2024
        %v2281 = vmul.f32 %v1513, %v2025
        %v2282 = vmul.f32 %v1514, %v2026
        %v2283 = vmul.f32 %v1515, %v2027
        %v2284 = vmul.f32 %v1516, %v2028
        %v2285 = vmul.f32 %v1517, %v2029
        %v2286 = vmul.f32 %v1518, %v2030
        %v2287 = vmul.f32 %v1519, %v2031
        %v2288 = vmul.f32 %v1520, %v2032
        %v2289 = vmul.f32 %v1521, %v2033
        %v2290 = vmul.f32 %v1522, %v2034
        %v2291 = vmul.f32 %v1523, %v2035
        %v2292 = vmul.f32 %v1524, %v2036
        %v2293 = vmul.f32 %v1525, %v2037
        %v2294 = vmul.f32 %v1526, %v2038
        %v2295 = vmul.f32 %v1527, %v2039
        %v2296 = vmul.f32 %v1528, %v2040
        %v2297 = vmul.f32 %v1529, %v2041
        %v2298 = vmul.f32 %v1530, %v2042
        %v2299 = vmul.f32 %v1531, %v2043
        %v2300 = vmul.f32 %v1532, %v2044
        %v2301 = vmul.f32 %v1533, %v2045
        %v2302 = vmul.f32 %v1534, %v2046
        %v2303 = vmul.f32 %v1535, %v2047
        %v2304 = vmul.f32 %v1536, %v2048
        %v2305 = vmul.f32 %v1537, %v2049
        %v2306 = vmul.f32 %v1538, %v2050
        %v2307 = vmul.f32 %v1539, %v2051
        %v2308 = vmul.f32 %v1540, %v2052
        %v2309 = vmul.f32 %v1541, %v2053
        %v2310 = vmul.f32 %v1542, %v2054
        %v2311 = vmul.f32 %v1543, %v2055
        %v2312 = vmul.f32 %v1544, %v2056
        %v2313 = vmul.f32 %v1545, %v2057
        %v2314 = vmul.f32 %v1546, %v2058
        %v2315 = vmul.f32 %v1547, %v2059
        %v2316 = vmul.f32 %v1548, %v2060
        %v2317 = vmul.f32 %v1549, %v2061
        %v2318 = vmul.f32 %v1550, %v2062
        %v2319 = vmul.f32 %v1551, %v2063
        %v2320 = vmul.f32 %v1552, %v2064
        %v2321 = vmul.f32 %v1553, %v2065
        %v2322 = vmul.f32 %v1554, %v2066
        %v2323 = vmul.f32 %v1555, %v2067
        %v2324 = vmul.f32 %v1556, %v2068
        %v2325 = vmul.f32 %v1557, %v2069
        %v2326 = vmul.f32 %v1558, %v2070
        %v2327 = vmul.f32 %v1559, %v2071
        %v2328 = vmul.f32 %v1560, %v2072
        %v2329 = vmul.f32 %v1561, %v2073
        %v2330 = vmul.f32 %v1562, %v2074
        %v2331 = vmul.f32 %v1563, %v2075
        %v2332 = vmul.f32 %v1564, %v2076
        %v2333 = vmul.f32 %v1565, %v2077
        %v2334 = vmul.f32 %v1566, %v2078
        %v2335 = vmul.f32 %v1567, %v2079
        %v2336 = vmul.f32 %v1568, %v2080
        %v2337 = vmul.f32 %v1569, %v2081
        %v2338 = vmul.f32 %v1570, %v2082
        %v2339 = vmul.f32 %v1571, %v2083
        %v2340 = vmul.f32 %v1572, %v2084
        %v2341 = vmul.f32 %v1573, %v2085
        %v2342 = vmul.f32 %v1574, %v2086
        %v2343 = vld [vmem:[%s3] sm:$0xf]
        %v2344 = vld [vmem:[%s3 + $0x4] sm:$0xf]
        %v2345 = vpack.c.bf16 %v2103, %v2087
        %v2346 = vpack.c.bf16 %v2104, %v2088
        %v2347 = vpack.c.bf16 %v2105, %v2089
        %v2348 = vpack.c.bf16 %v2106, %v2090
        %v2349 = vpack.c.bf16 %v2107, %v2091
        %v2350 = vpack.c.bf16 %v2108, %v2092
        %v2351 = vpack.c.bf16 %v2109, %v2093
        %v2352 = vpack.c.bf16 %v2110, %v2094
        %v2353 = vpack.c.bf16 %v2111, %v2095
        %v2354 = vpack.c.bf16 %v2112, %v2096
        %v2355 = vpack.c.bf16 %v2113, %v2097
        %v2356 = vpack.c.bf16 %v2114, %v2098
        %v2357 = vpack.c.bf16 %v2115, %v2099
        %v2358 = vpack.c.bf16 %v2116, %v2100
        %v2359 = vpack.c.bf16 %v2117, %v2101
        %v2360 = vpack.c.bf16 %v2118, %v2102
        %v2361 = vpack.c.bf16 %v2135, %v2119
        %v2362 = vpack.c.bf16 %v2136, %v2120
        %v2363 = vpack.c.bf16 %v2137, %v2121
        %v2364 = vpack.c.bf16 %v2138, %v2122
        %v2365 = vpack.c.bf16 %v2139, %v2123
        %v2366 = vpack.c.bf16 %v2140, %v2124
        %v2367 = vpack.c.bf16 %v2141, %v2125
        %v2368 = vpack.c.bf16 %v2142, %v2126
        %v2369 = vpack.c.bf16 %v2143, %v2127
        %v2370 = vpack.c.bf16 %v2144, %v2128
        %v2371 = vpack.c.bf16 %v2145, %v2129
        %v2372 = vpack.c.bf16 %v2146, %v2130
        %v2373 = vpack.c.bf16 %v2147, %v2131
        %v2374 = vpack.c.bf16 %v2148, %v2132
        %v2375 = vpack.c.bf16 %v2149, %v2133
        %v2376 = vpack.c.bf16 %v2150, %v2134
        %v2377 = vpack.c.bf16 %v2167, %v2151
        %v2378 = vpack.c.bf16 %v2168, %v2152
        %v2379 = vpack.c.bf16 %v2169, %v2153
        %v2380 = vpack.c.bf16 %v2170, %v2154
        %v2381 = vpack.c.bf16 %v2171, %v2155
        %v2382 = vpack.c.bf16 %v2172, %v2156
        %v2383 = vpack.c.bf16 %v2173, %v2157
        %v2384 = vpack.c.bf16 %v2174, %v2158
        %v2385 = vpack.c.bf16 %v2175, %v2159
        %v2386 = vpack.c.bf16 %v2176, %v2160
        %v2387 = vpack.c.bf16 %v2177, %v2161
        %v2388 = vpack.c.bf16 %v2178, %v2162
        %v2389 = vpack.c.bf16 %v2179, %v2163
        %v2390 = vpack.c.bf16 %v2180, %v2164
        %v2391 = vpack.c.bf16 %v2181, %v2165
        %v2392 = vpack.c.bf16 %v2182, %v2166
        %v2393 = vpack.c.bf16 %v2199, %v2183
        %v2394 = vpack.c.bf16 %v2200, %v2184
        %v2395 = vpack.c.bf16 %v2201, %v2185
        %v2396 = vpack.c.bf16 %v2202, %v2186
        %v2397 = vpack.c.bf16 %v2203, %v2187
        %v2398 = vpack.c.bf16 %v2204, %v2188
        %v2399 = vpack.c.bf16 %v2205, %v2189
        %v2400 = vpack.c.bf16 %v2206, %v2190
        %v2401 = vpack.c.bf16 %v2207, %v2191
        %v2402 = vpack.c.bf16 %v2208, %v2192
        %v2403 = vpack.c.bf16 %v2209, %v2193
        %v2404 = vpack.c.bf16 %v2210, %v2194
        %v2405 = vpack.c.bf16 %v2211, %v2195
        %v2406 = vpack.c.bf16 %v2212, %v2196
        %v2407 = vpack.c.bf16 %v2213, %v2197
        %v2408 = vpack.c.bf16 %v2214, %v2198
        %v2409 = vpack.c.bf16 %v2231, %v2215
        %v2410 = vpack.c.bf16 %v2232, %v2216
        %v2411 = vpack.c.bf16 %v2233, %v2217
        %v2412 = vpack.c.bf16 %v2234, %v2218
        %v2413 = vpack.c.bf16 %v2235, %v2219
        %v2414 = vpack.c.bf16 %v2236, %v2220
        %v2415 = vpack.c.bf16 %v2237, %v2221
        %v2416 = vpack.c.bf16 %v2238, %v2222
        %v2417 = vpack.c.bf16 %v2239, %v2223
        %v2418 = vpack.c.bf16 %v2240, %v2224
        %v2419 = vpack.c.bf16 %v2241, %v2225
        %v2420 = vpack.c.bf16 %v2242, %v2226
        %v2421 = vpack.c.bf16 %v2243, %v2227
        %v2422 = vpack.c.bf16 %v2244, %v2228
        %v2423 = vpack.c.bf16 %v2245, %v2229
        %v2424 = vpack.c.bf16 %v2246, %v2230
        %v2425 = vpack.c.bf16 %v2263, %v2247
        %v2426 = vpack.c.bf16 %v2264, %v2248
        %v2427 = vpack.c.bf16 %v2265, %v2249
        %v2428 = vpack.c.bf16 %v2266, %v2250
        %v2429 = vpack.c.bf16 %v2267, %v2251
        %v2430 = vpack.c.bf16 %v2268, %v2252
        %v2431 = vpack.c.bf16 %v2269, %v2253
        %v2432 = vpack.c.bf16 %v2270, %v2254
        %v2433 = vpack.c.bf16 %v2271, %v2255
        %v2434 = vpack.c.bf16 %v2272, %v2256
        %v2435 = vpack.c.bf16 %v2273, %v2257
        %v2436 = vpack.c.bf16 %v2274, %v2258
        %v2437 = vpack.c.bf16 %v2275, %v2259
        %v2438 = vpack.c.bf16 %v2276, %v2260
        %v2439 = vpack.c.bf16 %v2277, %v2261
        %v2440 = vpack.c.bf16 %v2278, %v2262
        %v2441 = vpack.c.bf16 %v2295, %v2279
        %v2442 = vpack.c.bf16 %v2296, %v2280
        %v2443 = vpack.c.bf16 %v2297, %v2281
        %v2444 = vpack.c.bf16 %v2298, %v2282
        %v2445 = vpack.c.bf16 %v2299, %v2283
        %v2446 = vpack.c.bf16 %v2300, %v2284
        %v2447 = vpack.c.bf16 %v2301, %v2285
        %v2448 = vpack.c.bf16 %v2302, %v2286
        %v2449 = vpack.c.bf16 %v2303, %v2287
        %v2450 = vpack.c.bf16 %v2304, %v2288
        %v2451 = vpack.c.bf16 %v2305, %v2289
        %v2452 = vpack.c.bf16 %v2306, %v2290
        %v2453 = vpack.c.bf16 %v2307, %v2291
        %v2454 = vpack.c.bf16 %v2308, %v2292
        %v2455 = vpack.c.bf16 %v2309, %v2293
        %v2456 = vpack.c.bf16 %v2310, %v2294
        %v2457 = vpack.c.bf16 %v2327, %v2311
        %v2458 = vpack.c.bf16 %v2328, %v2312
        %v2459 = vpack.c.bf16 %v2329, %v2313
        %v2460 = vpack.c.bf16 %v2330, %v2314
        %v2461 = vpack.c.bf16 %v2331, %v2315
        %v2462 = vpack.c.bf16 %v2332, %v2316
        %v2463 = vpack.c.bf16 %v2333, %v2317
        %v2464 = vpack.c.bf16 %v2334, %v2318
        %v2465 = vpack.c.bf16 %v2335, %v2319
        %v2466 = vpack.c.bf16 %v2336, %v2320
        %v2467 = vpack.c.bf16 %v2337, %v2321
        %v2468 = vpack.c.bf16 %v2338, %v2322
        %v2469 = vpack.c.bf16 %v2339, %v2323
        %v2470 = vpack.c.bf16 %v2340, %v2324
        %v2471 = vpack.c.bf16 %v2341, %v2325
        %v2472 = vpack.c.bf16 %v2342, %v2326
        %v2475 = vunpack.c.l.b16 %v2343
        %v2476 = vunpack.c.l.b16 %v2344
        %v2477 = vpack.c.b16 %v2476, %v2475
        %2479 = vmatprep.subr.bf16.mxu0 %v2458
        %2480 = vmatpush1.bf16.msra.mxu0 %v2457
        %2481 = vmatprep.subr.bf16.mxu0 %v2442
        %2482 = vmatpush1.bf16.msra.mxu0 %v2441
        %2483 = vmatprep.subr.bf16.mxu0 %v2426
        %2484 = vmatpush1.bf16.msra.mxu0 %v2425
        %2485 = vmatprep.subr.bf16.mxu0 %v2410
        %2486 = vmatpush1.bf16.msra.mxu0 %v2409
        %2487 = vmatprep.subr.bf16.mxu0 %v2394
        %2488 = vmatpush1.bf16.msra.mxu0 %v2393
        %2489 = vmatprep.subr.bf16.mxu0 %v2378
        %2490 = vmatpush1.bf16.msra.mxu0 %v2377
        %2491 = vmatprep.subr.bf16.mxu0 %v2362
        %2492 = vmatpush1.bf16.msra.mxu0 %v2361
        %2493 = vmatprep.subr.bf16.mxu0 %v2346
        %2494 = vmatpush1.bf16.msra.mxu0 %v2345
        %2495 = vmatprep.subr.bf16.mxu0 0
        %2496 = vmatpush2.bf16.msra.mxu0 0
        %2497 = vmatprep.subr.bf16.mxu0 0
        %2498 = vmatpush2.bf16.msra.mxu0 0
        %2499 = vmatprep.subr.bf16.mxu0 0
        %2500 = vmatpush2.bf16.msra.mxu0 0
        %2501 = vmatprep.subr.bf16.mxu0 0
        %2502 = vmatpush2.bf16.msra.mxu0 0
        %2503 = vmatprep.subr.bf16.mxu0 0
        %2504 = vmatpush2.bf16.msra.mxu0 0
        %2505 = vmatprep.subr.bf16.mxu0 0
        %2506 = vmatpush2.bf16.msra.mxu0 0
        %2507 = vmatprep.subr.bf16.mxu0 0
        %2508 = vmatpush2.bf16.msra.mxu0 0
        %2509 = vmatprep.subr.bf16.mxu0 0
        %2510 = vmatpush2.bf16.msra.mxu0 0
        %2511 = vmatprep.mubr.bf16.mxu0 0
        %2512 = vmatmul.mubr.bf16.gmra.mxu0 %v2477
        %v2513 = vpop.f32.mrf.mxu0
        %v2514 = vadd.f32 0.0, %v2513
        %v2515 = vpop.f32.mrf.mxu0
        %v2516 = vadd.f32 0.0, %v2515
        %v2517 = vpop.f32.mrf.mxu0
        %v2518 = vadd.f32 0.0, %v2517
        %v2519 = vpop.f32.mrf.mxu0
        %v2520 = vadd.f32 0.0, %v2519
        %2521 = vdwg.mxu0
        %2522 = vmatprep.subr.bf16.mxu0 %v2460
        %2523 = vmatpush1.bf16.msra.mxu0 %v2459
        %2524 = vmatprep.subr.bf16.mxu0 %v2444
        %2525 = vmatpush1.bf16.msra.mxu0 %v2443
        %2526 = vmatprep.subr.bf16.mxu0 %v2428
        %2527 = vmatpush1.bf16.msra.mxu0 %v2427
        %2528 = vmatprep.subr.bf16.mxu0 %v2412
        %2529 = vmatpush1.bf16.msra.mxu0 %v2411
        %2530 = vmatprep.subr.bf16.mxu0 %v2396
        %2531 = vmatpush1.bf16.msra.mxu0 %v2395
        %2532 = vmatprep.subr.bf16.mxu0 %v2380
        %2533 = vmatpush1.bf16.msra.mxu0 %v2379
        %2534 = vmatprep.subr.bf16.mxu0 %v2364
        %2535 = vmatpush1.bf16.msra.mxu0 %v2363
        %2536 = vmatprep.subr.bf16.mxu0 %v2348
        %2537 = vmatpush1.bf16.msra.mxu0 %v2347
        %2538 = vmatprep.subr.bf16.mxu0 0
        %2539 = vmatpush2.bf16.msra.mxu0 0
        %2540 = vmatprep.subr.bf16.mxu0 0
        %2541 = vmatpush2.bf16.msra.mxu0 0
        %2542 = vmatprep.subr.bf16.mxu0 0
        %2543 = vmatpush2.bf16.msra.mxu0 0
        %2544 = vmatprep.subr.bf16.mxu0 0
        %2545 = vmatpush2.bf16.msra.mxu0 0
        %2546 = vmatprep.subr.bf16.mxu0 0
        %2547 = vmatpush2.bf16.msra.mxu0 0
        %2548 = vmatprep.subr.bf16.mxu0 0
        %2549 = vmatpush2.bf16.msra.mxu0 0
        %2550 = vmatprep.subr.bf16.mxu0 0
        %2551 = vmatpush2.bf16.msra.mxu0 0
        %2552 = vmatprep.subr.bf16.mxu0 0
        %2553 = vmatpush2.bf16.msra.mxu0 0
        %2554 = vmatprep.mubr.bf16.mxu0 0
        %2555 = vmatmul.mubr.bf16.gmra.mxu0 %v2477
        %v2556 = vpop.f32.mrf.mxu0
        %v2557 = vadd.f32 0.0, %v2556
        %v2558 = vpop.f32.mrf.mxu0
        %v2559 = vadd.f32 0.0, %v2558
        %v2560 = vpop.f32.mrf.mxu0
        %v2561 = vadd.f32 0.0, %v2560
        %v2562 = vpop.f32.mrf.mxu0
        %v2563 = vadd.f32 0.0, %v2562
        %2564 = vdwg.mxu0
        %2565 = vmatprep.subr.bf16.mxu0 %v2462
        %2566 = vmatpush1.bf16.msra.mxu0 %v2461
        %2567 = vmatprep.subr.bf16.mxu0 %v2446
        %2568 = vmatpush1.bf16.msra.mxu0 %v2445
        %2569 = vmatprep.subr.bf16.mxu0 %v2430
        %2570 = vmatpush1.bf16.msra.mxu0 %v2429
        %2571 = vmatprep.subr.bf16.mxu0 %v2414
        %2572 = vmatpush1.bf16.msra.mxu0 %v2413
        %2573 = vmatprep.subr.bf16.mxu0 %v2398
        %2574 = vmatpush1.bf16.msra.mxu0 %v2397
        %2575 = vmatprep.subr.bf16.mxu0 %v2382
        %2576 = vmatpush1.bf16.msra.mxu0 %v2381
        %2577 = vmatprep.subr.bf16.mxu0 %v2366
        %2578 = vmatpush1.bf16.msra.mxu0 %v2365
        %2579 = vmatprep.subr.bf16.mxu0 %v2350
        %2580 = vmatpush1.bf16.msra.mxu0 %v2349
        %2581 = vmatprep.subr.bf16.mxu0 0
        %2582 = vmatpush2.bf16.msra.mxu0 0
        %2583 = vmatprep.subr.bf16.mxu0 0
        %2584 = vmatpush2.bf16.msra.mxu0 0
        %2585 = vmatprep.subr.bf16.mxu0 0
        %2586 = vmatpush2.bf16.msra.mxu0 0
        %2587 = vmatprep.subr.bf16.mxu0 0
        %2588 = vmatpush2.bf16.msra.mxu0 0
        %2589 = vmatprep.subr.bf16.mxu0 0
        %2590 = vmatpush2.bf16.msra.mxu0 0
        %2591 = vmatprep.subr.bf16.mxu0 0
        %2592 = vmatpush2.bf16.msra.mxu0 0
        %2593 = vmatprep.subr.bf16.mxu0 0
        %2594 = vmatpush2.bf16.msra.mxu0 0
        %2595 = vmatprep.subr.bf16.mxu0 0
        %2596 = vmatpush2.bf16.msra.mxu0 0
        %2597 = vmatprep.mubr.bf16.mxu0 0
        %2598 = vmatmul.mubr.bf16.gmra.mxu0 %v2477
        %v2599 = vpop.f32.mrf.mxu0
        %v2600 = vadd.f32 0.0, %v2599
        %v2601 = vpop.f32.mrf.mxu0
        %v2602 = vadd.f32 0.0, %v2601
        %v2603 = vpop.f32.mrf.mxu0
        %v2604 = vadd.f32 0.0, %v2603
        %v2605 = vpop.f32.mrf.mxu0
        %v2606 = vadd.f32 0.0, %v2605
        %2607 = vdwg.mxu0
        %2608 = vmatprep.subr.bf16.mxu0 %v2464
        %2609 = vmatpush1.bf16.msra.mxu0 %v2463
        %2610 = vmatprep.subr.bf16.mxu0 %v2448
        %2611 = vmatpush1.bf16.msra.mxu0 %v2447
        %2612 = vmatprep.subr.bf16.mxu0 %v2432
        %2613 = vmatpush1.bf16.msra.mxu0 %v2431
        %2614 = vmatprep.subr.bf16.mxu0 %v2416
        %2615 = vmatpush1.bf16.msra.mxu0 %v2415
        %2616 = vmatprep.subr.bf16.mxu0 %v2400
        %2617 = vmatpush1.bf16.msra.mxu0 %v2399
        %2618 = vmatprep.subr.bf16.mxu0 %v2384
        %2619 = vmatpush1.bf16.msra.mxu0 %v2383
        %2620 = vmatprep.subr.bf16.mxu0 %v2368
        %2621 = vmatpush1.bf16.msra.mxu0 %v2367
        %2622 = vmatprep.subr.bf16.mxu0 %v2352
        %2623 = vmatpush1.bf16.msra.mxu0 %v2351
        %2624 = vmatprep.subr.bf16.mxu0 0
        %2625 = vmatpush2.bf16.msra.mxu0 0
        %2626 = vmatprep.subr.bf16.mxu0 0
        %2627 = vmatpush2.bf16.msra.mxu0 0
        %2628 = vmatprep.subr.bf16.mxu0 0
        %2629 = vmatpush2.bf16.msra.mxu0 0
        %2630 = vmatprep.subr.bf16.mxu0 0
        %2631 = vmatpush2.bf16.msra.mxu0 0
        %2632 = vmatprep.subr.bf16.mxu0 0
        %2633 = vmatpush2.bf16.msra.mxu0 0
        %2634 = vmatprep.subr.bf16.mxu0 0
        %2635 = vmatpush2.bf16.msra.mxu0 0
        %2636 = vmatprep.subr.bf16.mxu0 0
        %2637 = vmatpush2.bf16.msra.mxu0 0
        %2638 = vmatprep.subr.bf16.mxu0 0
        %2639 = vmatpush2.bf16.msra.mxu0 0
        %2640 = vmatprep.mubr.bf16.mxu0 0
        %2641 = vmatmul.mubr.bf16.gmra.mxu0 %v2477
        %v2642 = vpop.f32.mrf.mxu0
        %v2643 = vadd.f32 0.0, %v2642
        %v2644 = vpop.f32.mrf.mxu0
        %v2645 = vadd.f32 0.0, %v2644
        %v2646 = vpop.f32.mrf.mxu0
        %v2647 = vadd.f32 0.0, %v2646
        %v2648 = vpop.f32.mrf.mxu0
        %v2649 = vadd.f32 0.0, %v2648
        %2650 = vdwg.mxu0
        %2651 = vmatprep.subr.bf16.mxu0 %v2466
        %2652 = vmatpush1.bf16.msra.mxu0 %v2465
        %2653 = vmatprep.subr.bf16.mxu0 %v2450
        %2654 = vmatpush1.bf16.msra.mxu0 %v2449
        %2655 = vmatprep.subr.bf16.mxu0 %v2434
        %2656 = vmatpush1.bf16.msra.mxu0 %v2433
        %2657 = vmatprep.subr.bf16.mxu0 %v2418
        %2658 = vmatpush1.bf16.msra.mxu0 %v2417
        %2659 = vmatprep.subr.bf16.mxu0 %v2402
        %2660 = vmatpush1.bf16.msra.mxu0 %v2401
        %2661 = vmatprep.subr.bf16.mxu0 %v2386
        %2662 = vmatpush1.bf16.msra.mxu0 %v2385
        %2663 = vmatprep.subr.bf16.mxu0 %v2370
        %2664 = vmatpush1.bf16.msra.mxu0 %v2369
        %2665 = vmatprep.subr.bf16.mxu0 %v2354
        %2666 = vmatpush1.bf16.msra.mxu0 %v2353
        %2667 = vmatprep.subr.bf16.mxu0 0
        %2668 = vmatpush2.bf16.msra.mxu0 0
        %2669 = vmatprep.subr.bf16.mxu0 0
        %2670 = vmatpush2.bf16.msra.mxu0 0
        %2671 = vmatprep.subr.bf16.mxu0 0
        %2672 = vmatpush2.bf16.msra.mxu0 0
        %2673 = vmatprep.subr.bf16.mxu0 0
        %2674 = vmatpush2.bf16.msra.mxu0 0
        %2675 = vmatprep.subr.bf16.mxu0 0
        %2676 = vmatpush2.bf16.msra.mxu0 0
        %2677 = vmatprep.subr.bf16.mxu0 0
        %2678 = vmatpush2.bf16.msra.mxu0 0
        %2679 = vmatprep.subr.bf16.mxu0 0
        %2680 = vmatpush2.bf16.msra.mxu0 0
        %2681 = vmatprep.subr.bf16.mxu0 0
        %2682 = vmatpush2.bf16.msra.mxu0 0
        %2683 = vmatprep.mubr.bf16.mxu0 0
        %2684 = vmatmul.mubr.bf16.gmra.mxu0 %v2477
        %v2685 = vpop.f32.mrf.mxu0
        %v2686 = vadd.f32 0.0, %v2685
        %v2687 = vpop.f32.mrf.mxu0
        %v2688 = vadd.f32 0.0, %v2687
        %v2689 = vpop.f32.mrf.mxu0
        %v2690 = vadd.f32 0.0, %v2689
        %v2691 = vpop.f32.mrf.mxu0
        %v2692 = vadd.f32 0.0, %v2691
        %2693 = vdwg.mxu0
        %2694 = vmatprep.subr.bf16.mxu0 %v2468
        %2695 = vmatpush1.bf16.msra.mxu0 %v2467
        %2696 = vmatprep.subr.bf16.mxu0 %v2452
        %2697 = vmatpush1.bf16.msra.mxu0 %v2451
        %2698 = vmatprep.subr.bf16.mxu0 %v2436
        %2699 = vmatpush1.bf16.msra.mxu0 %v2435
        %2700 = vmatprep.subr.bf16.mxu0 %v2420
        %2701 = vmatpush1.bf16.msra.mxu0 %v2419
        %2702 = vmatprep.subr.bf16.mxu0 %v2404
        %2703 = vmatpush1.bf16.msra.mxu0 %v2403
        %2704 = vmatprep.subr.bf16.mxu0 %v2388
        %2705 = vmatpush1.bf16.msra.mxu0 %v2387
        %2706 = vmatprep.subr.bf16.mxu0 %v2372
        %2707 = vmatpush1.bf16.msra.mxu0 %v2371
        %2708 = vmatprep.subr.bf16.mxu0 %v2356
        %2709 = vmatpush1.bf16.msra.mxu0 %v2355
        %2710 = vmatprep.subr.bf16.mxu0 0
        %2711 = vmatpush2.bf16.msra.mxu0 0
        %2712 = vmatprep.subr.bf16.mxu0 0
        %2713 = vmatpush2.bf16.msra.mxu0 0
        %2714 = vmatprep.subr.bf16.mxu0 0
        %2715 = vmatpush2.bf16.msra.mxu0 0
        %2716 = vmatprep.subr.bf16.mxu0 0
        %2717 = vmatpush2.bf16.msra.mxu0 0
        %2718 = vmatprep.subr.bf16.mxu0 0
        %2719 = vmatpush2.bf16.msra.mxu0 0
        %2720 = vmatprep.subr.bf16.mxu0 0
        %2721 = vmatpush2.bf16.msra.mxu0 0
        %2722 = vmatprep.subr.bf16.mxu0 0
        %2723 = vmatpush2.bf16.msra.mxu0 0
        %2724 = vmatprep.subr.bf16.mxu0 0
        %2725 = vmatpush2.bf16.msra.mxu0 0
        %2726 = vmatprep.mubr.bf16.mxu0 0
        %2727 = vmatmul.mubr.bf16.gmra.mxu0 %v2477
        %v2728 = vpop.f32.mrf.mxu0
        %v2729 = vadd.f32 0.0, %v2728
        %v2730 = vpop.f32.mrf.mxu0
        %v2731 = vadd.f32 0.0, %v2730
        %v2732 = vpop.f32.mrf.mxu0
        %v2733 = vadd.f32 0.0, %v2732
        %v2734 = vpop.f32.mrf.mxu0
        %v2735 = vadd.f32 0.0, %v2734
        %2736 = vdwg.mxu0
        %2737 = vmatprep.subr.bf16.mxu0 %v2470
        %2738 = vmatpush1.bf16.msra.mxu0 %v2469
        %2739 = vmatprep.subr.bf16.mxu0 %v2454
        %2740 = vmatpush1.bf16.msra.mxu0 %v2453
        %2741 = vmatprep.subr.bf16.mxu0 %v2438
        %2742 = vmatpush1.bf16.msra.mxu0 %v2437
        %2743 = vmatprep.subr.bf16.mxu0 %v2422
        %2744 = vmatpush1.bf16.msra.mxu0 %v2421
        %2745 = vmatprep.subr.bf16.mxu0 %v2406
        %2746 = vmatpush1.bf16.msra.mxu0 %v2405
        %2747 = vmatprep.subr.bf16.mxu0 %v2390
        %2748 = vmatpush1.bf16.msra.mxu0 %v2389
        %2749 = vmatprep.subr.bf16.mxu0 %v2374
        %2750 = vmatpush1.bf16.msra.mxu0 %v2373
        %2751 = vmatprep.subr.bf16.mxu0 %v2358
        %2752 = vmatpush1.bf16.msra.mxu0 %v2357
        %2753 = vmatprep.subr.bf16.mxu0 0
        %2754 = vmatpush2.bf16.msra.mxu0 0
        %2755 = vmatprep.subr.bf16.mxu0 0
        %2756 = vmatpush2.bf16.msra.mxu0 0
        %2757 = vmatprep.subr.bf16.mxu0 0
        %2758 = vmatpush2.bf16.msra.mxu0 0
        %2759 = vmatprep.subr.bf16.mxu0 0
        %2760 = vmatpush2.bf16.msra.mxu0 0
        %2761 = vmatprep.subr.bf16.mxu0 0
        %2762 = vmatpush2.bf16.msra.mxu0 0
        %2763 = vmatprep.subr.bf16.mxu0 0
        %2764 = vmatpush2.bf16.msra.mxu0 0
        %2765 = vmatprep.subr.bf16.mxu0 0
        %2766 = vmatpush2.bf16.msra.mxu0 0
        %2767 = vmatprep.subr.bf16.mxu0 0
        %2768 = vmatpush2.bf16.msra.mxu0 0
        %2769 = vmatprep.mubr.bf16.mxu0 0
        %2770 = vmatmul.mubr.bf16.gmra.mxu0 %v2477
        %v2771 = vpop.f32.mrf.mxu0
        %v2772 = vadd.f32 0.0, %v2771
        %v2773 = vpop.f32.mrf.mxu0
        %v2774 = vadd.f32 0.0, %v2773
        %v2775 = vpop.f32.mrf.mxu0
        %v2776 = vadd.f32 0.0, %v2775
        %v2777 = vpop.f32.mrf.mxu0
        %v2778 = vadd.f32 0.0, %v2777
        %2779 = vdwg.mxu0
        %2780 = vmatprep.subr.bf16.mxu0 %v2472
        %2781 = vmatpush1.bf16.msra.mxu0 %v2471
        %2782 = vmatprep.subr.bf16.mxu0 %v2456
        %2783 = vmatpush1.bf16.msra.mxu0 %v2455
        %2784 = vmatprep.subr.bf16.mxu0 %v2440
        %2785 = vmatpush1.bf16.msra.mxu0 %v2439
        %2786 = vmatprep.subr.bf16.mxu0 %v2424
        %2787 = vmatpush1.bf16.msra.mxu0 %v2423
        %2788 = vmatprep.subr.bf16.mxu0 %v2408
        %2789 = vmatpush1.bf16.msra.mxu0 %v2407
        %2790 = vmatprep.subr.bf16.mxu0 %v2392
        %2791 = vmatpush1.bf16.msra.mxu0 %v2391
        %2792 = vmatprep.subr.bf16.mxu0 %v2376
        %2793 = vmatpush1.bf16.msra.mxu0 %v2375
        %2794 = vmatprep.subr.bf16.mxu0 %v2360
        %2795 = vmatpush1.bf16.msra.mxu0 %v2359
        %2796 = vmatprep.subr.bf16.mxu0 0
        %2797 = vmatpush2.bf16.msra.mxu0 0
        %2798 = vmatprep.subr.bf16.mxu0 0
        %2799 = vmatpush2.bf16.msra.mxu0 0
        %2800 = vmatprep.subr.bf16.mxu0 0
        %2801 = vmatpush2.bf16.msra.mxu0 0
        %2802 = vmatprep.subr.bf16.mxu0 0
        %2803 = vmatpush2.bf16.msra.mxu0 0
        %2804 = vmatprep.subr.bf16.mxu0 0
        %2805 = vmatpush2.bf16.msra.mxu0 0
        %2806 = vmatprep.subr.bf16.mxu0 0
        %2807 = vmatpush2.bf16.msra.mxu0 0
        %2808 = vmatprep.subr.bf16.mxu0 0
        %2809 = vmatpush2.bf16.msra.mxu0 0
        %2810 = vmatprep.subr.bf16.mxu0 0
        %2811 = vmatpush2.bf16.msra.mxu0 0
        %2812 = vmatprep.mubr.bf16.mxu0 0
        %2813 = vmatmul.mubr.bf16.gmra.mxu0 %v2477
        %v2814 = vpop.f32.mrf.mxu0
        %v2815 = vadd.f32 0.0, %v2814
        %v2816 = vpop.f32.mrf.mxu0
        %v2817 = vadd.f32 0.0, %v2816
        %v2818 = vpop.f32.mrf.mxu0
        %v2819 = vadd.f32 0.0, %v2818
        %v2820 = vpop.f32.mrf.mxu0
        %v2821 = vadd.f32 0.0, %v2820
        %2822 = vdwg.mxu0
        %v2823 = vld [vmem:[%s233] sm:$0xff]
        %v2824 = vld [vmem:[%s233 + $0x8] sm:$0xff]
        %v2825 = vunpack.c.l.bf16 %v2823
        %v2826 = vunpack.c.h.bf16 %v2823
        %v2827 = vunpack.c.l.bf16 %v2824
        %v2828 = vunpack.c.h.bf16 %v2824
        %v2829 = vmul.f32 %v2825, 0.5
        %v2830 = vmul.f32 %v2826, 0.5
        %v2831 = vmul.f32 %v2827, 0.5
        %v2832 = vmul.f32 %v2828, 0.5
        %v2833 = vtanh.pop %v2829
        %v2834 = vtanh.pop %v2830
        %v2835 = vtanh.pop %v2831
        %v2836 = vtanh.pop %v2832
        %v2837 = vadd.f32 %v2833, 1.0
        %v2838 = vadd.f32 %v2834, 1.0
        %v2839 = vadd.f32 %v2835, 1.0
        %v2840 = vadd.f32 %v2836, 1.0
        %v2841 = vmul.f32 %v2829, %v2837
        %v2842 = vmul.f32 %v2830, %v2838
        %v2843 = vmul.f32 %v2831, %v2839
        %v2844 = vmul.f32 %v2832, %v2840
        %v2845 = vlaneseq
        %v2846 = vshrl.u32 %v2845, 7
        %v2847 = vadd.s32 %v2846, 8
        %vm2848 = vcmp.eq.s32.totalorder %v2846, 0
        %vm2849 = vcmp.eq.s32.totalorder %v2847, 0
        %v2854 = vlaneseq
        %v2855 = vshrl.u32 %v2854, 7
        %v2856 = vsub.s32 0, %v2855
        %v2857 = vrot.slane %v2841, %v2856
        %v2858 = vlaneseq
        %v2859 = vshrl.u32 %v2858, 7
        %v2860 = vsub.s32 2, %v2859
        %v2861 = vrot.slane %v2841, %v2860
        %v2862 = vlaneseq
        %v2863 = vshrl.u32 %v2862, 7
        %v2864 = vsub.s32 4, %v2863
        %v2865 = vrot.slane %v2841, %v2864
        %v2866 = vlaneseq
        %v2867 = vshrl.u32 %v2866, 7
        %v2868 = vsub.s32 6, %v2867
        %v2869 = vrot.slane %v2841, %v2868
        %v2870 = vlaneseq
        %v2871 = vshrl.u32 %v2870, 7
        %v2872 = vsub.s32 0, %v2871
        %v2873 = vrot.slane %v2842, %v2872
        %v2874 = vlaneseq
        %v2875 = vshrl.u32 %v2874, 7
        %v2876 = vsub.s32 2, %v2875
        %v2877 = vrot.slane %v2842, %v2876
        %v2878 = vlaneseq
        %v2879 = vshrl.u32 %v2878, 7
        %v2880 = vsub.s32 4, %v2879
        %v2881 = vrot.slane %v2842, %v2880
        %v2882 = vlaneseq
        %v2883 = vshrl.u32 %v2882, 7
        %v2884 = vsub.s32 6, %v2883
        %v2885 = vrot.slane %v2842, %v2884
        %v2886 = vlaneseq
        %v2887 = vshrl.u32 %v2886, 7
        %v2888 = vsub.s32 0, %v2887
        %v2889 = vrot.slane %v2843, %v2888
        %v2890 = vlaneseq
        %v2891 = vshrl.u32 %v2890, 7
        %v2892 = vsub.s32 2, %v2891
        %v2893 = vrot.slane %v2843, %v2892
        %v2894 = vlaneseq
        %v2895 = vshrl.u32 %v2894, 7
        %v2896 = vsub.s32 4, %v2895
        %v2897 = vrot.slane %v2843, %v2896
        %v2898 = vlaneseq
        %v2899 = vshrl.u32 %v2898, 7
        %v2900 = vsub.s32 6, %v2899
        %v2901 = vrot.slane %v2843, %v2900
        %v2902 = vlaneseq
        %v2903 = vshrl.u32 %v2902, 7
        %v2904 = vsub.s32 0, %v2903
        %v2905 = vrot.slane %v2844, %v2904
        %v2906 = vlaneseq
        %v2907 = vshrl.u32 %v2906, 7
        %v2908 = vsub.s32 2, %v2907
        %v2909 = vrot.slane %v2844, %v2908
        %v2910 = vlaneseq
        %v2911 = vshrl.u32 %v2910, 7
        %v2912 = vsub.s32 4, %v2911
        %v2913 = vrot.slane %v2844, %v2912
        %v2914 = vlaneseq
        %v2915 = vshrl.u32 %v2914, 7
        %v2916 = vsub.s32 6, %v2915
        %v2917 = vrot.slane %v2844, %v2916
        %v2934 = vlaneseq
        %v2935 = vshrl.u32 %v2934, 7
        %v2936 = vsub.s32 0, %v2935
        %v2937 = vrot.slane %v2857, %v2936
        %v2938 = vlaneseq
        %v2939 = vshrl.u32 %v2938, 7
        %v2940 = vsub.s32 0, %v2939
        %v2941 = vrot.slane %v2861, %v2940
        %v2942 = vlaneseq
        %v2943 = vshrl.u32 %v2942, 7
        %v2944 = vsub.s32 0, %v2943
        %v2945 = vrot.slane %v2865, %v2944
        %v2946 = vlaneseq
        %v2947 = vshrl.u32 %v2946, 7
        %v2948 = vsub.s32 0, %v2947
        %v2949 = vrot.slane %v2869, %v2948
        %v2950 = vlaneseq
        %v2951 = vshrl.u32 %v2950, 7
        %v2952 = vsub.s32 0, %v2951
        %v2953 = vrot.slane %v2873, %v2952
        %v2954 = vlaneseq
        %v2955 = vshrl.u32 %v2954, 7
        %v2956 = vsub.s32 0, %v2955
        %v2957 = vrot.slane %v2877, %v2956
        %v2958 = vlaneseq
        %v2959 = vshrl.u32 %v2958, 7
        %v2960 = vsub.s32 0, %v2959
        %v2961 = vrot.slane %v2881, %v2960
        %v2962 = vlaneseq
        %v2963 = vshrl.u32 %v2962, 7
        %v2964 = vsub.s32 0, %v2963
        %v2965 = vrot.slane %v2885, %v2964
        %v2966 = vlaneseq
        %v2967 = vshrl.u32 %v2966, 7
        %v2968 = vsub.s32 0, %v2967
        %v2969 = vrot.slane %v2889, %v2968
        %v2970 = vlaneseq
        %v2971 = vshrl.u32 %v2970, 7
        %v2972 = vsub.s32 0, %v2971
        %v2973 = vrot.slane %v2893, %v2972
        %v2974 = vlaneseq
        %v2975 = vshrl.u32 %v2974, 7
        %v2976 = vsub.s32 0, %v2975
        %v2977 = vrot.slane %v2897, %v2976
        %v2978 = vlaneseq
        %v2979 = vshrl.u32 %v2978, 7
        %v2980 = vsub.s32 0, %v2979
        %v2981 = vrot.slane %v2901, %v2980
        %v2982 = vlaneseq
        %v2983 = vshrl.u32 %v2982, 7
        %v2984 = vsub.s32 0, %v2983
        %v2985 = vrot.slane %v2905, %v2984
        %v2986 = vlaneseq
        %v2987 = vshrl.u32 %v2986, 7
        %v2988 = vsub.s32 0, %v2987
        %v2989 = vrot.slane %v2909, %v2988
        %v2990 = vlaneseq
        %v2991 = vshrl.u32 %v2990, 7
        %v2992 = vsub.s32 0, %v2991
        %v2993 = vrot.slane %v2913, %v2992
        %v2994 = vlaneseq
        %v2995 = vshrl.u32 %v2994, 7
        %v2996 = vsub.s32 0, %v2995
        %v2997 = vrot.slane %v2917, %v2996
        %v2998 = vsel %vm2848, %v2937, %v2514
        %v2999 = vsel %vm2848, %v2941, %v2516
        %v3000 = vsel %vm2848, %v2945, %v2557
        %v3001 = vsel %vm2848, %v2949, %v2559
        %v3002 = vsel %vm2848, %v2953, %v2600
        %v3003 = vsel %vm2848, %v2957, %v2602
        %v3004 = vsel %vm2848, %v2961, %v2643
        %v3005 = vsel %vm2848, %v2965, %v2645
        %v3006 = vsel %vm2848, %v2969, %v2686
        %v3007 = vsel %vm2848, %v2973, %v2688
        %v3008 = vsel %vm2848, %v2977, %v2729
        %v3009 = vsel %vm2848, %v2981, %v2731
        %v3010 = vsel %vm2848, %v2985, %v2772
        %v3011 = vsel %vm2848, %v2989, %v2774
        %v3012 = vsel %vm2848, %v2993, %v2815
        %v3013 = vsel %vm2848, %v2997, %v2817
        %v3014 = vsel %vm2849, %v2937, %v2518
        %v3015 = vsel %vm2849, %v2941, %v2520
        %v3016 = vsel %vm2849, %v2945, %v2561
        %v3017 = vsel %vm2849, %v2949, %v2563
        %v3018 = vsel %vm2849, %v2953, %v2604
        %v3019 = vsel %vm2849, %v2957, %v2606
        %v3020 = vsel %vm2849, %v2961, %v2647
        %v3021 = vsel %vm2849, %v2965, %v2649
        %v3022 = vsel %vm2849, %v2969, %v2690
        %v3023 = vsel %vm2849, %v2973, %v2692
        %v3024 = vsel %vm2849, %v2977, %v2733
        %v3025 = vsel %vm2849, %v2981, %v2735
        %v3026 = vsel %vm2849, %v2985, %v2776
        %v3027 = vsel %vm2849, %v2989, %v2778
        %v3028 = vsel %vm2849, %v2993, %v2819
        %v3029 = vsel %vm2849, %v2997, %v2821
        %3030 = vst [vmem:[%s229] sm:$0xff] %v2998
        %3031 = vst [vmem:[%s229 + $0x8] sm:$0xff] %v2999
        %3032 = vst [vmem:[%s229 + $0x10] sm:$0xff] %v3000
        %3033 = vst [vmem:[%s229 + $0x18] sm:$0xff] %v3001
        %3034 = vst [vmem:[%s229 + $0x20] sm:$0xff] %v3002
        %3035 = vst [vmem:[%s229 + $0x28] sm:$0xff] %v3003
        %3036 = vst [vmem:[%s229 + $0x30] sm:$0xff] %v3004
        %3037 = vst [vmem:[%s229 + $0x38] sm:$0xff] %v3005
        %3038 = vst [vmem:[%s229 + $0x40] sm:$0xff] %v3006
        %3039 = vst [vmem:[%s229 + $0x48] sm:$0xff] %v3007
        %3040 = vst [vmem:[%s229 + $0x50] sm:$0xff] %v3008
        %3041 = vst [vmem:[%s229 + $0x58] sm:$0xff] %v3009
        %3042 = vst [vmem:[%s229 + $0x60] sm:$0xff] %v3010
        %3043 = vst [vmem:[%s229 + $0x68] sm:$0xff] %v3011
        %3044 = vst [vmem:[%s229 + $0x70] sm:$0xff] %v3012
        %3045 = vst [vmem:[%s229 + $0x78] sm:$0xff] %v3013
        %3046 = vst [vmem:[%s229 + $0x80] sm:$0xff] %v3014
        %3047 = vst [vmem:[%s229 + $0x88] sm:$0xff] %v3015
        %3048 = vst [vmem:[%s229 + $0x90] sm:$0xff] %v3016
        %3049 = vst [vmem:[%s229 + $0x98] sm:$0xff] %v3017
        %3050 = vst [vmem:[%s229 + $0xa0] sm:$0xff] %v3018
        %3051 = vst [vmem:[%s229 + $0xa8] sm:$0xff] %v3019
        %3052 = vst [vmem:[%s229 + $0xb0] sm:$0xff] %v3020
        %3053 = vst [vmem:[%s229 + $0xb8] sm:$0xff] %v3021
        %3054 = vst [vmem:[%s229 + $0xc0] sm:$0xff] %v3022
        %3055 = vst [vmem:[%s229 + $0xc8] sm:$0xff] %v3023
        %3056 = vst [vmem:[%s229 + $0xd0] sm:$0xff] %v3024
        %3057 = vst [vmem:[%s229 + $0xd8] sm:$0xff] %v3025
        %3058 = vst [vmem:[%s229 + $0xe0] sm:$0xff] %v3026
        %3059 = vst [vmem:[%s229 + $0xe8] sm:$0xff] %v3027
        %3060 = vst [vmem:[%s229 + $0xf0] sm:$0xff] %v3028
        %3061 = vst [vmem:[%s229 + $0xf8] sm:$0xff] %v3029
        %s3062 = sand.u32 %s123, 1
        %s3063 = scalar_lea.sflag [#allocation4], %s3062
        %s3064 = sand.u32 %s123, 1
        %s3065 = smul.addr %s3064, 256
        %s3066 = scalar_lea.vmem [#allocation5], %s3065
        // Predicated region
        $region41: #{tpu_custom_call.1} parent=35 // pred_check
          %p3067 = pneg %p133
        $region42: #{tpu_custom_call.1} parent=35 // pred_check_branch
          %3069 = sbr.rel (%p3067) target = $region44
        $region43: #{tpu_custom_call.1} parent=35 // pred_region
          %s3070 = smul.u32 16, %s21
          %s3072 = ssub.s32 4096, 4096
          %3073 = vsyncadd %s3063, %s3072
          %s3074 = smul.addr %s3070, 128
          %s3075 = scalar_lea.hbm %s4, %s3074
          %s3076 = sshll.u32 %s3066, 4
          %s3077 = int_to_ptr.vmem [resolvable:$true] %s3076
          %3082 = dma.vmem_to_hbm [thread:$0]  %s3077, 4096, %s3075, %s3063, 2048, 4096, 128
        $region44: #{tpu_custom_call.1} parent=35 // pred_fallthru
          _
      $region36: #{tpu_custom_call.1} parent=5 // pred_fallthru
        _
      %p3083 = scmp.le.s32.totalorder 2, %s16
      // Predicated region
      $region45: #{tpu_custom_call.1} parent=5 // pred_check
        %p3084 = pneg %p3083
      $region46: #{tpu_custom_call.1} parent=5 // pred_check_branch
        %3086 = sbr.rel (%p3084) target = $region48
      $region47: #{tpu_custom_call.1} parent=5 // pred_region
        %s3087 = ssub.s32 %s16, 2
        // Predicated region
        $region49: #{tpu_custom_call.1} parent=47 // pred_check
          %p3088 = pneg %p139
        $region50: #{tpu_custom_call.1} parent=47 // pred_check_branch
          %3090 = sbr.rel (%p3088) target = $region52
        $region51: #{tpu_custom_call.1} parent=47 // pred_region
          %s3091 = sand.u32 %s124, 1
          %s3092 = scalar_lea.sflag [#allocation4], %s3091
          %s3093 = sand.u32 %s124, 1
          %s3094 = smul.addr %s3093, 256
          %s3095 = scalar_lea.vmem [#allocation5], %s3094
          %3096 = dma.done %s3092, 4096
        $region52: #{tpu_custom_call.1} parent=47 // pred_fallthru
          _
      $region48: #{tpu_custom_call.1} parent=5 // pred_fallthru
        _
    $region6: #{tpu_custom_call.1} parent=1 // loop_footer
      %s20 = sadd.s32 1, %s16
    $region7: #{tpu_custom_call.1} parent=1 // loop_footer_branch
      %15 = sbr.rel target = $region3
    $region8: #{tpu_custom_call.1} parent=1 // loop_exit
      _
    %3097 = vsyncpa [#allocation3], 1
    %s3098 = scalar_lea.sflag [#allocation3], 1
    %3099 = vsyncpa %s3098, 1
    %3100 = vsyncpa [#allocation4], 1
    %s3101 = scalar_lea.sflag [#allocation4], 1
    %3102 = vsyncpa %s3101, 1

</llo_original>
